<compile_context>
chip_gen: v6e
topology: v6e:2x2x1
jax: 0.10.0
libtpu: 0.0.40
codegen_flags: <defaults>
</compile_context>

<pallas_src>
import jax
import jax.numpy as jnp
from jax import lax
from jax.experimental import pallas as pl
from jax.experimental.pallas import tpu as pltpu


# ----------------------------------------------------------------------------
# Stage 1: encoder + RNN input projection, hoisted out of the recurrence.
#   u = tanh(x @ We + be) @ Wzh + F @ Wfh + bh     (parallel over M = T*B rows)
# ----------------------------------------------------------------------------
def _encode_kernel(x_ref, f_ref, We_ref, be_ref, Wzh_ref, Wfh_ref, bh_ref, u_ref):
    z = jnp.tanh(
        jnp.dot(x_ref[...], We_ref[...], preferred_element_type=jnp.float32)
        + be_ref[...])
    u_ref[...] = (
        jnp.dot(z, Wzh_ref[...], preferred_element_type=jnp.float32)
        + jnp.dot(f_ref[...], Wfh_ref[...], preferred_element_type=jnp.float32)
        + bh_ref[...])


# ----------------------------------------------------------------------------
# Stage 2: recurrence.  One grid point per batch block; T-step loop in-kernel,
# hidden state carried in vregs.  h_t = tanh(u_t + h_{t-1} @ Whh)
# ----------------------------------------------------------------------------
def _recurrence_kernel(u_ref, h0_ref, Whh_ref, hseq_ref, hlast_ref):
    T = u_ref.shape[0]
    Whh = Whh_ref[...]

    def step(t, h):
        h_new = jnp.tanh(
            u_ref[t] + jnp.dot(h, Whh, preferred_element_type=jnp.float32))
        hseq_ref[t] = h_new
        return h_new

    hlast_ref[...] = lax.fori_loop(0, T, step, h0_ref[...], unroll=True)


# ----------------------------------------------------------------------------
# Stage 3: decoder, hoisted.  x' = (h @ Wout + bout) @ Wd + bd   (parallel over M)
# ----------------------------------------------------------------------------
def _decode_kernel(h_ref, Wout_ref, bout_ref, Wd_ref, bd_ref, x_ref):
    z_new = (jnp.dot(h_ref[...], Wout_ref[...], preferred_element_type=jnp.float32)
             + bout_ref[...])
    x_ref[...] = (jnp.dot(z_new, Wd_ref[...], preferred_element_type=jnp.float32)
                  + bd_ref[...])


# ----------------------------------------------------------------------------
# Wrapper helpers.
# ----------------------------------------------------------------------------
def _pick_m_tile(m, preferred=256):
    """Largest row tile (multiple of 8, <= preferred) dividing m; else full m."""
    if m <= preferred:
        return m
    for tm in range(preferred - preferred % 8, 7, -8):
        if m % tm == 0:
            return tm
    return m


def _encode_all_steps(x_flat, f_flat, params, m_tile):
    M, D = x_flat.shape
    F_dim = f_flat.shape[1]
    L = params["We"].shape[1]
    H_hid = params["Wzh"].shape[1]
    tm = _pick_m_tile(M, m_tile)
    const = lambda i: (0, 0)
    return pl.pallas_call(
        _encode_kernel,
        out_shape=jax.ShapeDtypeStruct((M, H_hid), jnp.float32),
        grid=(M // tm,),
        in_specs=[
            pl.BlockSpec((tm, D),         lambda i: (i, 0)),   # x rows (streamed)
            pl.BlockSpec((tm, F_dim),     lambda i: (i, 0)),   # F rows (streamed)
            pl.BlockSpec((D, L),          const),              # We   (VMEM-resident)
            pl.BlockSpec((1, L),          const),              # be
            pl.BlockSpec((L, H_hid),      const),              # Wzh
            pl.BlockSpec((F_dim, H_hid),  const),              # Wfh
            pl.BlockSpec((1, H_hid),      const),              # bh
        ],
        out_specs=pl.BlockSpec((tm, H_hid), lambda i: (i, 0)),
        compiler_params=pltpu.CompilerParams(dimension_semantics=("parallel",)),
    )(x_flat, f_flat, params["We"], params["be"], params["Wzh"],
      params["Wfh"], params["bh"])


def _run_recurrence(u_seq, hidden, Whh, batch_block):
    T, B, H_hid = u_seq.shape
    bb = B if batch_block is None else batch_block
    assert B % bb == 0 and (bb == B or bb % 8 == 0), \
        "batch block must equal B or be a multiple of 8"
    nb = B // bb
    return pl.pallas_call(
        _recurrence_kernel,
        out_shape=(jax.ShapeDtypeStruct((T, B, H_hid), jnp.float32),
                   jax.ShapeDtypeStruct((B, H_hid), jnp.float32)),
        grid=(nb,),
        in_specs=[
            pl.BlockSpec((T, bb, H_hid), lambda b: (0, b, 0)),  # u_seq for this block
            pl.BlockSpec((bb, H_hid),    lambda b: (b, 0)),     # h0
            pl.BlockSpec((H_hid, H_hid), lambda b: (0, 0)),     # Whh (resident)
        ],
        out_specs=(
            pl.BlockSpec((T, bb, H_hid), lambda b: (0, b, 0)),  # h_seq
            pl.BlockSpec((bb, H_hid),    lambda b: (b, 0)),     # final hidden
        ),
        compiler_params=pltpu.CompilerParams(dimension_semantics=("parallel",)),
    )(u_seq, hidden, Whh)


def _decode_all_steps(h_flat, params, D, m_tile):
    M, H_hid = h_flat.shape
    L = params["Wout"].shape[1]
    tm = _pick_m_tile(M, m_tile)
    const = lambda i: (0, 0)
    return pl.pallas_call(
        _decode_kernel,
        out_shape=jax.ShapeDtypeStruct((M, D), jnp.float32),
        grid=(M // tm,),
        in_specs=[
            pl.BlockSpec((tm, H_hid), lambda i: (i, 0)),        # h rows (streamed)
            pl.BlockSpec((H_hid, L),  const),                   # Wout (resident)
            pl.BlockSpec((1, L),      const),                   # bout
            pl.BlockSpec((L, D),      const),                   # Wd   (resident)
            pl.BlockSpec((1, D),      const),                   # bd
        ],
        out_specs=pl.BlockSpec((tm, D), lambda i: (i, 0)),
        compiler_params=pltpu.CompilerParams(dimension_semantics=("parallel",)),
    )(h_flat, params["Wout"], params["bout"], params["Wd"], params["bd"])


# ----------------------------------------------------------------------------
# Public API: T-step rollout and single-step forward.
# ----------------------------------------------------------------------------
def macro_and_autoencoder_rollout(x_seq, F_seq, hidden, params, *,
                                  batch_block=None, m_tile=256):
    """x_seq: [T,B,C,H,W] f32, F_seq: [T,B,F_dim] f32, hidden: [B,H_hid] f32 or None.

    Returns (x_new_seq [T,B,C,H,W] f32, hidden_last [B,H_hid] f32), i.e. the
    result of applying MacroAndAutoencoder.forward T times with streamed inputs.
    """
    T, B, C, H, W = x_seq.shape
    D = C * H * W
    H_hid = params["Whh"].shape[0]
    if hidden is None:
        hidden = jnp.zeros((B, H_hid), jnp.float32)
    M = T * B

    x_flat = x_seq.reshape(M, D)                    # f32, no wrapper-side dtype cast
    f_flat = F_seq.reshape(M, F_seq.shape[-1])

    # Stage 1: encoder + RNN input projection for all T steps at once.
    u_flat = _encode_all_steps(x_flat, f_flat, params, m_tile)
    u_seq = u_flat.reshape(T, B, H_hid)

    # Stage 2: serial recurrence (in-kernel unrolled loop, h kept in vregs).
    h_seq, h_last = _run_recurrence(u_seq, hidden, params["Whh"], batch_block)

    # Stage 3: decoder for all T steps at once.
    x_new_flat = _decode_all_steps(h_seq.reshape(M, H_hid), params, D, m_tile)
    return x_new_flat.reshape(T, B, C, H, W), h_last


def macro_and_autoencoder_forward(x_nchw, F, hidden, params):
    """Single step, matching MacroAndAutoencoder.forward(input, hidden)."""
    x_new_seq, h_new = macro_and_autoencoder_rollout(
        x_nchw[None], F[None], hidden, params)
    return x_new_seq[0], h_new


# ----------------------------------------------------------------------------
# Deterministic parameter initialization (synthetic; no checkpoint loading).
# ----------------------------------------------------------------------------
def init_params(key, D, L, F_dim, H_hid):
    ks = jax.random.split(key, 10)
    s = 0.05
    n = lambda k, shape: s * jax.random.normal(k, shape, jnp.float32)
    return {
        "We":   n(ks[0], (D, L)),         "be":   n(ks[1], (1, L)),
        "Wzh":  n(ks[2], (L, H_hid)),     "Wfh":  n(ks[3], (F_dim, H_hid)),
        "Whh":  n(ks[4], (H_hid, H_hid)), "bh":   n(ks[5], (1, H_hid)),
        "Wout": n(ks[6], (H_hid, L)),     "bout": n(ks[7], (1, L)),
        "Wd":   n(ks[8], (L, D)),         "bd":   n(ks[9], (1, D)),
    }


# ----------------------------------------------------------------------------
# Pure-JAX references (original f32 per-step math).
# ----------------------------------------------------------------------------
def reference_step(x, F, hidden, params):
    B = x.shape[0]
    x_flat = x.reshape(B, -1)
    z = jnp.tanh(x_flat @ params["We"] + params["be"])
    h_new = jnp.tanh(z @ params["Wzh"] + F @ params["Wfh"]
                     + hidden @ params["Whh"] + params["bh"])
    z_new = h_new @ params["Wout"] + params["bout"]
    x_new = (z_new @ params["Wd"] + params["bd"]).reshape(x.shape)
    return x_new, h_new


def reference_rollout(x_seq, F_seq, hidden, params):
    xs, h = [], hidden
    for t in range(x_seq.shape[0]):
        x_new, h = reference_step(x_seq[t], F_seq[t], h, params)
        xs.append(x_new)
    return jnp.stack(xs), h


if __name__ == "__main__":
    B, C, H, W = 2, 4, 16, 16          # state x, NCHW
    F_dim, L, H_hid, T = 2, 32, 32, 8  # forcing dim, latent, hidden, rollout steps
    D = C * H * W

    key = jax.random.PRNGKey(0)
    kx, kF, kh, kp = jax.random.split(key, 4)
    x_seq = jax.random.normal(kx, (T, B, C, H, W), jnp.float32)
    F_seq = jax.random.normal(kF, (T, B, F_dim), jnp.float32)
    hidden = jax.random.normal(kh, (B, H_hid), jnp.float32)
    params = init_params(kp, D, L, F_dim, H_hid)

    # Fused T-step rollout: encoder/decoder hoisted to parallel M=T*B kernels,
    # recurrence as one in-kernel unrolled loop.
    rollout = jax.jit(macro_and_autoencoder_rollout)
    x_new_seq, h_last = rollout(x_seq, F_seq, hidden, params)
    x_new_seq = jax.block_until_ready(x_new_seq)
    h_last = jax.block_until_ready(h_last)

    # Single-step forward (original module signature).
    x1, h1 = jax.jit(macro_and_autoencoder_forward)(x_seq[0], F_seq[0], hidden, params)
    x1 = jax.block_until_ready(x1)
    h1 = jax.block_until_ready(h1)

    # Fidelity vs the original per-step f32 math (all-f32 kernel; tolerance only
    # covers MXU default-precision / add-ordering differences).
    xf_ref, hf_ref = reference_rollout(x_seq, F_seq, hidden, params)
    assert x_new_seq.shape == (T, B, C, H, W) and h_last.shape == (B, H_hid)
    assert jnp.allclose(x_new_seq, xf_ref, atol=5e-3), \
        float(jnp.max(jnp.abs(x_new_seq - xf_ref)))
    assert jnp.allclose(h_last, hf_ref, atol=5e-3), \
        float(jnp.max(jnp.abs(h_last - hf_ref)))

    x1_ref, h1_ref = reference_step(x_seq[0], F_seq[0], hidden, params)
    assert x1.shape == (B, C, H, W) and h1.shape == (B, H_hid)
    assert jnp.allclose(x1, x1_ref, atol=5e-3)
    assert jnp.allclose(h1, h1_ref, atol=5e-3)

    print("KERNEL_OK")
</pallas_src>

<mosaic_0001>
module attributes {stable_mosaic.version = 11 : i64} {
  func.func @_encode_kernel(%arg0: i32, %arg1: memref<16x1024xf32, #tpu.memory_space<vmem>>, %arg2: memref<16x2xf32, #tpu.memory_space<vmem>>, %arg3: memref<1024x32xf32, #tpu.memory_space<vmem>>, %arg4: memref<1x32xf32, #tpu.memory_space<vmem>>, %arg5: memref<32x32xf32, #tpu.memory_space<vmem>>, %arg6: memref<2x32xf32, #tpu.memory_space<vmem>>, %arg7: memref<1x32xf32, #tpu.memory_space<vmem>>, %arg8: memref<16x32xf32, #tpu.memory_space<vmem>>) attributes {dimension_semantics = [#tpu.dimension_semantics<parallel>], iteration_bounds = array<i64: 1>, scalar_prefetch = 0 : i64, scratch_operands = 0 : i64, tpu.core_type = #tpu.core_type<tc>, window_params = [{transform_indices = @transform_0, window_bounds = array<i64: 16, 1024>}, {transform_indices = @transform_1, window_bounds = array<i64: 16, 2>}, {pipeline_mode = #tpu.pipeline_mode<synchronous>, transform_indices = @transform_2, window_bounds = array<i64: 1024, 32>}, {pipeline_mode = #tpu.pipeline_mode<synchronous>, transform_indices = @transform_3, window_bounds = array<i64: 1, 32>}, {pipeline_mode = #tpu.pipeline_mode<synchronous>, transform_indices = @transform_4, window_bounds = array<i64: 32, 32>}, {pipeline_mode = #tpu.pipeline_mode<synchronous>, transform_indices = @transform_5, window_bounds = array<i64: 2, 32>}, {pipeline_mode = #tpu.pipeline_mode<synchronous>, transform_indices = @transform_6, window_bounds = array<i64: 1, 32>}, {transform_indices = @transform_7, window_bounds = array<i64: 16, 32>}]} {
    %c0 = arith.constant 0 : index
    %c0_0 = arith.constant 0 : index
    %0 = vector.load %arg1[%c0, %c0_0] : memref<16x1024xf32, #tpu.memory_space<vmem>>, vector<16x1024xf32>
    %c0_1 = arith.constant 0 : index
    %c0_2 = arith.constant 0 : index
    %1 = vector.load %arg3[%c0_1, %c0_2] : memref<1024x32xf32, #tpu.memory_space<vmem>>, vector<1024x32xf32>
    %cst = arith.constant dense<0.000000e+00> : vector<16x32xf32>
    %2 = tpu.matmul %0, %1, %cst {dimension_numbers = #tpu.dot_dimension_numbers<[1], [0], [0], [1], [0, 0, 1, 1], [], []>} : vector<16x1024xf32>, vector<1024x32xf32>, vector<16x32xf32> -> vector<16x32xf32>
    %c0_3 = arith.constant 0 : index
    %c0_4 = arith.constant 0 : index
    %3 = vector.load %arg4[%c0_3, %c0_4] : memref<1x32xf32, #tpu.memory_space<vmem>>, vector<1x32xf32>
    %4 = vector.broadcast %3 : vector<1x32xf32> to vector<16x32xf32>
    %5 = arith.addf %2, %4 : vector<16x32xf32>
    %6 = math.tanh %5 : vector<16x32xf32>
    %c0_5 = arith.constant 0 : index
    %c0_6 = arith.constant 0 : index
    %7 = vector.load %arg5[%c0_5, %c0_6] : memref<32x32xf32, #tpu.memory_space<vmem>>, vector<32x32xf32>
    %cst_7 = arith.constant dense<0.000000e+00> : vector<16x32xf32>
    %8 = tpu.matmul %6, %7, %cst_7 {dimension_numbers = #tpu.dot_dimension_numbers<[1], [0], [0], [1], [0, 0, 1, 1], [], []>} : vector<16x32xf32>, vector<32x32xf32>, vector<16x32xf32> -> vector<16x32xf32>
    %c0_8 = arith.constant 0 : index
    %c0_9 = arith.constant 0 : index
    %9 = vector.load %arg2[%c0_8, %c0_9] : memref<16x2xf32, #tpu.memory_space<vmem>>, vector<16x2xf32>
    %c0_10 = arith.constant 0 : index
    %c0_11 = arith.constant 0 : index
    %10 = vector.load %arg6[%c0_10, %c0_11] : memref<2x32xf32, #tpu.memory_space<vmem>>, vector<2x32xf32>
    %cst_12 = arith.constant dense<0.000000e+00> : vector<16x32xf32>
    %11 = tpu.matmul %9, %10, %cst_12 {dimension_numbers = #tpu.dot_dimension_numbers<[1], [0], [0], [1], [0, 0, 1, 1], [], []>} : vector<16x2xf32>, vector<2x32xf32>, vector<16x32xf32> -> vector<16x32xf32>
    %12 = arith.addf %8, %11 : vector<16x32xf32>
    %c0_13 = arith.constant 0 : index
    %c0_14 = arith.constant 0 : index
    %13 = vector.load %arg7[%c0_13, %c0_14] : memref<1x32xf32, #tpu.memory_space<vmem>>, vector<1x32xf32>
    %14 = vector.broadcast %13 : vector<1x32xf32> to vector<16x32xf32>
    %15 = arith.addf %12, %14 : vector<16x32xf32>
    %c0_15 = arith.constant 0 : index
    %c0_16 = arith.constant 0 : index
    %16 = vector.load %arg8[%c0_15, %c0_16] : memref<16x32xf32, #tpu.memory_space<vmem>>, vector<16x32xf32>
    tpu.vector_store %arg8[%c0_15, %c0_16], %15 {strides = array<i32>} : memref<16x32xf32, #tpu.memory_space<vmem>>, vector<16x32xf32>,
    return
  }
  func.func @transform_0(%arg0: i32) -> (i32, i32) {
    %c0_i32 = arith.constant 0 : i32
    %c0_i32_0 = arith.constant 0 : i32
    return %arg0, %c0_i32 : i32, i32
  }
  func.func @transform_1(%arg0: i32) -> (i32, i32) {
    %c0_i32 = arith.constant 0 : i32
    %c0_i32_0 = arith.constant 0 : i32
    return %arg0, %c0_i32 : i32, i32
  }
  func.func @transform_2(%arg0: i32) -> (i32, i32) {
    %c0_i32 = arith.constant 0 : i32
    %c0_i32_0 = arith.constant 0 : i32
    %c0_i32_1 = arith.constant 0 : i32
    return %c0_i32, %c0_i32_0 : i32, i32
  }
  func.func @transform_3(%arg0: i32) -> (i32, i32) {
    %c0_i32 = arith.constant 0 : i32
    %c0_i32_0 = arith.constant 0 : i32
    %c0_i32_1 = arith.constant 0 : i32
    return %c0_i32, %c0_i32_0 : i32, i32
  }
  func.func @transform_4(%arg0: i32) -> (i32, i32) {
    %c0_i32 = arith.constant 0 : i32
    %c0_i32_0 = arith.constant 0 : i32
    %c0_i32_1 = arith.constant 0 : i32
    return %c0_i32, %c0_i32_0 : i32, i32
  }
  func.func @transform_5(%arg0: i32) -> (i32, i32) {
    %c0_i32 = arith.constant 0 : i32
    %c0_i32_0 = arith.constant 0 : i32
    %c0_i32_1 = arith.constant 0 : i32
    return %c0_i32, %c0_i32_0 : i32, i32
  }
  func.func @transform_6(%arg0: i32) -> (i32, i32) {
    %c0_i32 = arith.constant 0 : i32
    %c0_i32_0 = arith.constant 0 : i32
    %c0_i32_1 = arith.constant 0 : i32
    return %c0_i32, %c0_i32_0 : i32, i32
  }
  func.func @transform_7(%arg0: i32) -> (i32, i32) {
    %c0_i32 = arith.constant 0 : i32
    %c0_i32_0 = arith.constant 0 : i32
    return %arg0, %c0_i32 : i32, i32
  }
}

module attributes {stable_mosaic.version = 11 : i64} {
  func.func @_decode_kernel(%arg0: i32, %arg1: memref<16x32xf32, #tpu.memory_space<vmem>>, %arg2: memref<32x32xf32, #tpu.memory_space<vmem>>, %arg3: memref<1x32xf32, #tpu.memory_space<vmem>>, %arg4: memref<32x1024xf32, #tpu.memory_space<vmem>>, %arg5: memref<1x1024xf32, #tpu.memory_space<vmem>>, %arg6: memref<16x1024xf32, #tpu.memory_space<vmem>>) attributes {dimension_semantics = [#tpu.dimension_semantics<parallel>], iteration_bounds = array<i64: 1>, scalar_prefetch = 0 : i64, scratch_operands = 0 : i64, tpu.core_type = #tpu.core_type<tc>, window_params = [{transform_indices = @transform_0, window_bounds = array<i64: 16, 32>}, {pipeline_mode = #tpu.pipeline_mode<synchronous>, transform_indices = @transform_1, window_bounds = array<i64: 32, 32>}, {pipeline_mode = #tpu.pipeline_mode<synchronous>, transform_indices = @transform_2, window_bounds = array<i64: 1, 32>}, {pipeline_mode = #tpu.pipeline_mode<synchronous>, transform_indices = @transform_3, window_bounds = array<i64: 32, 1024>}, {pipeline_mode = #tpu.pipeline_mode<synchronous>, transform_indices = @transform_4, window_bounds = array<i64: 1, 1024>}, {transform_indices = @transform_5, window_bounds = array<i64: 16, 1024>}]} {
    %c0 = arith.constant 0 : index
    %c0_0 = arith.constant 0 : index
    %0 = vector.load %arg1[%c0, %c0_0] : memref<16x32xf32, #tpu.memory_space<vmem>>, vector<16x32xf32>
    %c0_1 = arith.constant 0 : index
    %c0_2 = arith.constant 0 : index
    %1 = vector.load %arg2[%c0_1, %c0_2] : memref<32x32xf32, #tpu.memory_space<vmem>>, vector<32x32xf32>
    %cst = arith.constant dense<0.000000e+00> : vector<16x32xf32>
    %2 = tpu.matmul %0, %1, %cst {dimension_numbers = #tpu.dot_dimension_numbers<[1], [0], [0], [1], [0, 0, 1, 1], [], []>} : vector<16x32xf32>, vector<32x32xf32>, vector<16x32xf32> -> vector<16x32xf32>
    %c0_3 = arith.constant 0 : index
    %c0_4 = arith.constant 0 : index
    %3 = vector.load %arg3[%c0_3, %c0_4] : memref<1x32xf32, #tpu.memory_space<vmem>>, vector<1x32xf32>
    %4 = vector.broadcast %3 : vector<1x32xf32> to vector<16x32xf32>
    %5 = arith.addf %2, %4 : vector<16x32xf32>
    %c0_5 = arith.constant 0 : index
    %c0_6 = arith.constant 0 : index
    %6 = vector.load %arg4[%c0_5, %c0_6] : memref<32x1024xf32, #tpu.memory_space<vmem>>, vector<32x1024xf32>
    %cst_7 = arith.constant dense<0.000000e+00> : vector<16x1024xf32>
    %7 = tpu.matmul %5, %6, %cst_7 {dimension_numbers = #tpu.dot_dimension_numbers<[1], [0], [0], [1], [0, 0, 1, 1], [], []>} : vector<16x32xf32>, vector<32x1024xf32>, vector<16x1024xf32> -> vector<16x1024xf32>
    %c0_8 = arith.constant 0 : index
    %c0_9 = arith.constant 0 : index
    %8 = vector.load %arg5[%c0_8, %c0_9] : memref<1x1024xf32, #tpu.memory_space<vmem>>, vector<1x1024xf32>
    %9 = vector.broadcast %8 : vector<1x1024xf32> to vector<16x1024xf32>
    %10 = arith.addf %7, %9 : vector<16x1024xf32>
    %c0_10 = arith.constant 0 : index
    %c0_11 = arith.constant 0 : index
    %11 = vector.load %arg6[%c0_10, %c0_11] : memref<16x1024xf32, #tpu.memory_space<vmem>>, vector<16x1024xf32>
    tpu.vector_store %arg6[%c0_10, %c0_11], %10 {strides = array<i32>} : memref<16x1024xf32, #tpu.memory_space<vmem>>, vector<16x1024xf32>,
    return
  }
  func.func @transform_0(%arg0: i32) -> (i32, i32) {
    %c0_i32 = arith.constant 0 : i32
    %c0_i32_0 = arith.constant 0 : i32
    return %arg0, %c0_i32 : i32, i32
  }
  func.func @transform_1(%arg0: i32) -> (i32, i32) {
    %c0_i32 = arith.constant 0 : i32
    %c0_i32_0 = arith.constant 0 : i32
    %c0_i32_1 = arith.constant 0 : i32
    return %c0_i32, %c0_i32_0 : i32, i32
  }
  func.func @transform_2(%arg0: i32) -> (i32, i32) {
    %c0_i32 = arith.constant 0 : i32
    %c0_i32_0 = arith.constant 0 : i32
    %c0_i32_1 = arith.constant 0 : i32
    return %c0_i32, %c0_i32_0 : i32, i32
  }
  func.func @transform_3(%arg0: i32) -> (i32, i32) {
    %c0_i32 = arith.constant 0 : i32
    %c0_i32_0 = arith.constant 0 : i32
    %c0_i32_1 = arith.constant 0 : i32
    return %c0_i32, %c0_i32_0 : i32, i32
  }
  func.func @transform_4(%arg0: i32) -> (i32, i32) {
    %c0_i32 = arith.constant 0 : i32
    %c0_i32_0 = arith.constant 0 : i32
    %c0_i32_1 = arith.constant 0 : i32
    return %c0_i32, %c0_i32_0 : i32, i32
  }
  func.func @transform_5(%arg0: i32) -> (i32, i32) {
    %c0_i32 = arith.constant 0 : i32
    %c0_i32_0 = arith.constant 0 : i32
    return %arg0, %c0_i32 : i32, i32
  }
}

module attributes {stable_mosaic.version = 11 : i64} {
  func.func @_recurrence_kernel(%arg0: i32, %arg1: memref<8x2x32xf32, #tpu.memory_space<vmem>>, %arg2: memref<2x32xf32, #tpu.memory_space<vmem>>, %arg3: memref<32x32xf32, #tpu.memory_space<vmem>>, %arg4: memref<8x2x32xf32, #tpu.memory_space<vmem>>, %arg5: memref<2x32xf32, #tpu.memory_space<vmem>>) attributes {dimension_semantics = [#tpu.dimension_semantics<parallel>], iteration_bounds = array<i64: 1>, scalar_prefetch = 0 : i64, scratch_operands = 0 : i64, tpu.core_type = #tpu.core_type<tc>, window_params = [{transform_indices = @transform_0, window_bounds = array<i64: 8, 2, 32>}, {transform_indices = @transform_1, window_bounds = array<i64: 2, 32>}, {pipeline_mode = #tpu.pipeline_mode<synchronous>, transform_indices = @transform_2, window_bounds = array<i64: 32, 32>}, {transform_indices = @transform_3, window_bounds = array<i64: 8, 2, 32>}, {transform_indices = @transform_4, window_bounds = array<i64: 2, 32>}]} {
    %c0 = arith.constant 0 : index
    %c0_0 = arith.constant 0 : index
    %0 = vector.load %arg3[%c0, %c0_0] : memref<32x32xf32, #tpu.memory_space<vmem>>, vector<32x32xf32>
    %c0_1 = arith.constant 0 : index
    %c0_2 = arith.constant 0 : index
    %1 = vector.load %arg2[%c0_1, %c0_2] : memref<2x32xf32, #tpu.memory_space<vmem>>, vector<2x32xf32>
    %c0_i32 = arith.constant 0 : i32
    %2 = arith.index_cast %c0_i32 : i32 to index
    %c0_3 = arith.constant 0 : index
    %c0_4 = arith.constant 0 : index
    %3 = vector.load %arg1[%2, %c0_3, %c0_4] : memref<8x2x32xf32, #tpu.memory_space<vmem>>, vector<1x2x32xf32>
    %4 = vector.shape_cast %3 : vector<1x2x32xf32> to vector<2x32xf32>
    %cst = arith.constant dense<0.000000e+00> : vector<2x32xf32>
    %5 = tpu.matmul %1, %0, %cst {dimension_numbers = #tpu.dot_dimension_numbers<[1], [0], [0], [1], [0, 0, 1, 1], [], []>} : vector<2x32xf32>, vector<32x32xf32>, vector<2x32xf32> -> vector<2x32xf32>
    %6 = arith.addf %4, %5 : vector<2x32xf32>
    %7 = math.tanh %6 : vector<2x32xf32>
    %8 = arith.index_cast %c0_i32 : i32 to index
    %c0_5 = arith.constant 0 : index
    %c0_6 = arith.constant 0 : index
    %9 = vector.load %arg4[%8, %c0_5, %c0_6] : memref<8x2x32xf32, #tpu.memory_space<vmem>>, vector<1x2x32xf32>
    %10 = vector.shape_cast %9 : vector<1x2x32xf32> to vector<2x32xf32>
    %11 = vector.shape_cast %7 : vector<2x32xf32> to vector<1x2x32xf32>
    tpu.vector_store %arg4[%8, %c0_5, %c0_6], %11 {strides = array<i32>} : memref<8x2x32xf32, #tpu.memory_space<vmem>>, vector<1x2x32xf32>,
    %c1_i32 = arith.constant 1 : i32
    %12 = arith.index_cast %c1_i32 : i32 to index
    %c0_7 = arith.constant 0 : index
    %c0_8 = arith.constant 0 : index
    %13 = vector.load %arg1[%12, %c0_7, %c0_8] : memref<8x2x32xf32, #tpu.memory_space<vmem>>, vector<1x2x32xf32>
    %14 = vector.shape_cast %13 : vector<1x2x32xf32> to vector<2x32xf32>
    %cst_9 = arith.constant dense<0.000000e+00> : vector<2x32xf32>
    %15 = tpu.matmul %7, %0, %cst_9 {dimension_numbers = #tpu.dot_dimension_numbers<[1], [0], [0], [1], [0, 0, 1, 1], [], []>} : vector<2x32xf32>, vector<32x32xf32>, vector<2x32xf32> -> vector<2x32xf32>
    %16 = arith.addf %14, %15 : vector<2x32xf32>
    %17 = math.tanh %16 : vector<2x32xf32>
    %18 = arith.index_cast %c1_i32 : i32 to index
    %c0_10 = arith.constant 0 : index
    %c0_11 = arith.constant 0 : index
    %19 = vector.load %arg4[%18, %c0_10, %c0_11] : memref<8x2x32xf32, #tpu.memory_space<vmem>>, vector<1x2x32xf32>
    %20 = vector.shape_cast %19 : vector<1x2x32xf32> to vector<2x32xf32>
    %21 = vector.shape_cast %17 : vector<2x32xf32> to vector<1x2x32xf32>
    tpu.vector_store %arg4[%18, %c0_10, %c0_11], %21 {strides = array<i32>} : memref<8x2x32xf32, #tpu.memory_space<vmem>>, vector<1x2x32xf32>,
    %c2_i32 = arith.constant 2 : i32
    %22 = arith.index_cast %c2_i32 : i32 to index
    %c0_12 = arith.constant 0 : index
    %c0_13 = arith.constant 0 : index
    %23 = vector.load %arg1[%22, %c0_12, %c0_13] : memref<8x2x32xf32, #tpu.memory_space<vmem>>, vector<1x2x32xf32>
    %24 = vector.shape_cast %23 : vector<1x2x32xf32> to vector<2x32xf32>
    %cst_14 = arith.constant dense<0.000000e+00> : vector<2x32xf32>
    %25 = tpu.matmul %17, %0, %cst_14 {dimension_numbers = #tpu.dot_dimension_numbers<[1], [0], [0], [1], [0, 0, 1, 1], [], []>} : vector<2x32xf32>, vector<32x32xf32>, vector<2x32xf32> -> vector<2x32xf32>
    %26 = arith.addf %24, %25 : vector<2x32xf32>
    %27 = math.tanh %26 : vector<2x32xf32>
    %28 = arith.index_cast %c2_i32 : i32 to index
    %c0_15 = arith.constant 0 : index
    %c0_16 = arith.constant 0 : index
    %29 = vector.load %arg4[%28, %c0_15, %c0_16] : memref<8x2x32xf32, #tpu.memory_space<vmem>>, vector<1x2x32xf32>
    %30 = vector.shape_cast %29 : vector<1x2x32xf32> to vector<2x32xf32>
    %31 = vector.shape_cast %27 : vector<2x32xf32> to vector<1x2x32xf32>
    tpu.vector_store %arg4[%28, %c0_15, %c0_16], %31 {strides = array<i32>} : memref<8x2x32xf32, #tpu.memory_space<vmem>>, vector<1x2x32xf32>,
    %c3_i32 = arith.constant 3 : i32
    %32 = arith.index_cast %c3_i32 : i32 to index
    %c0_17 = arith.constant 0 : index
    %c0_18 = arith.constant 0 : index
    %33 = vector.load %arg1[%32, %c0_17, %c0_18] : memref<8x2x32xf32, #tpu.memory_space<vmem>>, vector<1x2x32xf32>
    %34 = vector.shape_cast %33 : vector<1x2x32xf32> to vector<2x32xf32>
    %cst_19 = arith.constant dense<0.000000e+00> : vector<2x32xf32>
    %35 = tpu.matmul %27, %0, %cst_19 {dimension_numbers = #tpu.dot_dimension_numbers<[1], [0], [0], [1], [0, 0, 1, 1], [], []>} : vector<2x32xf32>, vector<32x32xf32>, vector<2x32xf32> -> vector<2x32xf32>
    %36 = arith.addf %34, %35 : vector<2x32xf32>
    %37 = math.tanh %36 : vector<2x32xf32>
    %38 = arith.index_cast %c3_i32 : i32 to index
    %c0_20 = arith.constant 0 : index
    %c0_21 = arith.constant 0 : index
    %39 = vector.load %arg4[%38, %c0_20, %c0_21] : memref<8x2x32xf32, #tpu.memory_space<vmem>>, vector<1x2x32xf32>
    %40 = vector.shape_cast %39 : vector<1x2x32xf32> to vector<2x32xf32>
    %41 = vector.shape_cast %37 : vector<2x32xf32> to vector<1x2x32xf32>
    tpu.vector_store %arg4[%38, %c0_20, %c0_21], %41 {strides = array<i32>} : memref<8x2x32xf32, #tpu.memory_space<vmem>>, vector<1x2x32xf32>,
    %c4_i32 = arith.constant 4 : i32
    %42 = arith.index_cast %c4_i32 : i32 to index
    %c0_22 = arith.constant 0 : index
    %c0_23 = arith.constant 0 : index
    %43 = vector.load %arg1[%42, %c0_22, %c0_23] : memref<8x2x32xf32, #tpu.memory_space<vmem>>, vector<1x2x32xf32>
    %44 = vector.shape_cast %43 : vector<1x2x32xf32> to vector<2x32xf32>
    %cst_24 = arith.constant dense<0.000000e+00> : vector<2x32xf32>
    %45 = tpu.matmul %37, %0, %cst_24 {dimension_numbers = #tpu.dot_dimension_numbers<[1], [0], [0], [1], [0, 0, 1, 1], [], []>} : vector<2x32xf32>, vector<32x32xf32>, vector<2x32xf32> -> vector<2x32xf32>
    %46 = arith.addf %44, %45 : vector<2x32xf32>
    %47 = math.tanh %46 : vector<2x32xf32>
    %48 = arith.index_cast %c4_i32 : i32 to index
    %c0_25 = arith.constant 0 : index
    %c0_26 = arith.constant 0 : index
    %49 = vector.load %arg4[%48, %c0_25, %c0_26] : memref<8x2x32xf32, #tpu.memory_space<vmem>>, vector<1x2x32xf32>
    %50 = vector.shape_cast %49 : vector<1x2x32xf32> to vector<2x32xf32>
    %51 = vector.shape_cast %47 : vector<2x32xf32> to vector<1x2x32xf32>
    tpu.vector_store %arg4[%48, %c0_25, %c0_26], %51 {strides = array<i32>} : memref<8x2x32xf32, #tpu.memory_space<vmem>>, vector<1x2x32xf32>,
    %c5_i32 = arith.constant 5 : i32
    %52 = arith.index_cast %c5_i32 : i32 to index
    %c0_27 = arith.constant 0 : index
    %c0_28 = arith.constant 0 : index
    %53 = vector.load %arg1[%52, %c0_27, %c0_28] : memref<8x2x32xf32, #tpu.memory_space<vmem>>, vector<1x2x32xf32>
    %54 = vector.shape_cast %53 : vector<1x2x32xf32> to vector<2x32xf32>
    %cst_29 = arith.constant dense<0.000000e+00> : vector<2x32xf32>
    %55 = tpu.matmul %47, %0, %cst_29 {dimension_numbers = #tpu.dot_dimension_numbers<[1], [0], [0], [1], [0, 0, 1, 1], [], []>} : vector<2x32xf32>, vector<32x32xf32>, vector<2x32xf32> -> vector<2x32xf32>
    %56 = arith.addf %54, %55 : vector<2x32xf32>
    %57 = math.tanh %56 : vector<2x32xf32>
    %58 = arith.index_cast %c5_i32 : i32 to index
    %c0_30 = arith.constant 0 : index
    %c0_31 = arith.constant 0 : index
    %59 = vector.load %arg4[%58, %c0_30, %c0_31] : memref<8x2x32xf32, #tpu.memory_space<vmem>>, vector<1x2x32xf32>
    %60 = vector.shape_cast %59 : vector<1x2x32xf32> to vector<2x32xf32>
    %61 = vector.shape_cast %57 : vector<2x32xf32> to vector<1x2x32xf32>
    tpu.vector_store %arg4[%58, %c0_30, %c0_31], %61 {strides = array<i32>} : memref<8x2x32xf32, #tpu.memory_space<vmem>>, vector<1x2x32xf32>,
    %c6_i32 = arith.constant 6 : i32
    %62 = arith.index_cast %c6_i32 : i32 to index
    %c0_32 = arith.constant 0 : index
    %c0_33 = arith.constant 0 : index
    %63 = vector.load %arg1[%62, %c0_32, %c0_33] : memref<8x2x32xf32, #tpu.memory_space<vmem>>, vector<1x2x32xf32>
    %64 = vector.shape_cast %63 : vector<1x2x32xf32> to vector<2x32xf32>
    %cst_34 = arith.constant dense<0.000000e+00> : vector<2x32xf32>
    %65 = tpu.matmul %57, %0, %cst_34 {dimension_numbers = #tpu.dot_dimension_numbers<[1], [0], [0], [1], [0, 0, 1, 1], [], []>} : vector<2x32xf32>, vector<32x32xf32>, vector<2x32xf32> -> vector<2x32xf32>
    %66 = arith.addf %64, %65 : vector<2x32xf32>
    %67 = math.tanh %66 : vector<2x32xf32>
    %68 = arith.index_cast %c6_i32 : i32 to index
    %c0_35 = arith.constant 0 : index
    %c0_36 = arith.constant 0 : index
    %69 = vector.load %arg4[%68, %c0_35, %c0_36] : memref<8x2x32xf32, #tpu.memory_space<vmem>>, vector<1x2x32xf32>
    %70 = vector.shape_cast %69 : vector<1x2x32xf32> to vector<2x32xf32>
    %71 = vector.shape_cast %67 : vector<2x32xf32> to vector<1x2x32xf32>
    tpu.vector_store %arg4[%68, %c0_35, %c0_36], %71 {strides = array<i32>} : memref<8x2x32xf32, #tpu.memory_space<vmem>>, vector<1x2x32xf32>,
    %c7_i32 = arith.constant 7 : i32
    %72 = arith.index_cast %c7_i32 : i32 to index
    %c0_37 = arith.constant 0 : index
    %c0_38 = arith.constant 0 : index
    %73 = vector.load %arg1[%72, %c0_37, %c0_38] : memref<8x2x32xf32, #tpu.memory_space<vmem>>, vector<1x2x32xf32>
    %74 = vector.shape_cast %73 : vector<1x2x32xf32> to vector<2x32xf32>
    %cst_39 = arith.constant dense<0.000000e+00> : vector<2x32xf32>
    %75 = tpu.matmul %67, %0, %cst_39 {dimension_numbers = #tpu.dot_dimension_numbers<[1], [0], [0], [1], [0, 0, 1, 1], [], []>} : vector<2x32xf32>, vector<32x32xf32>, vector<2x32xf32> -> vector<2x32xf32>
    %76 = arith.addf %74, %75 : vector<2x32xf32>
    %77 = math.tanh %76 : vector<2x32xf32>
    %78 = arith.index_cast %c7_i32 : i32 to index
    %c0_40 = arith.constant 0 : index
    %c0_41 = arith.constant 0 : index
    %79 = vector.load %arg4[%78, %c0_40, %c0_41] : memref<8x2x32xf32, #tpu.memory_space<vmem>>, vector<1x2x32xf32>
    %80 = vector.shape_cast %79 : vector<1x2x32xf32> to vector<2x32xf32>
    %81 = vector.shape_cast %77 : vector<2x32xf32> to vector<1x2x32xf32>
    tpu.vector_store %arg4[%78, %c0_40, %c0_41], %81 {strides = array<i32>} : memref<8x2x32xf32, #tpu.memory_space<vmem>>, vector<1x2x32xf32>,
    %c8_i32 = arith.constant 8 : i32
    %c0_42 = arith.constant 0 : index
    %c0_43 = arith.constant 0 : index
    %82 = vector.load %arg5[%c0_42, %c0_43] : memref<2x32xf32, #tpu.memory_space<vmem>>, vector<2x32xf32>
    tpu.vector_store %arg5[%c0_42, %c0_43], %77 {strides = array<i32>} : memref<2x32xf32, #tpu.memory_space<vmem>>, vector<2x32xf32>,
    return
  }
  func.func @transform_0(%arg0: i32) -> (i32, i32, i32) {
    %c0_i32 = arith.constant 0 : i32
    %c0_i32_0 = arith.constant 0 : i32
    %c0_i32_1 = arith.constant 0 : i32
    return %c0_i32, %arg0, %c0_i32_0 : i32, i32, i32
  }
  func.func @transform_1(%arg0: i32) -> (i32, i32) {
    %c0_i32 = arith.constant 0 : i32
    %c0_i32_0 = arith.constant 0 : i32
    return %arg0, %c0_i32 : i32, i32
  }
  func.func @transform_2(%arg0: i32) -> (i32, i32) {
    %c0_i32 = arith.constant 0 : i32
    %c0_i32_0 = arith.constant 0 : i32
    %c0_i32_1 = arith.constant 0 : i32
    return %c0_i32, %c0_i32_0 : i32, i32
  }
  func.func @transform_3(%arg0: i32) -> (i32, i32, i32) {
    %c0_i32 = arith.constant 0 : i32
    %c0_i32_0 = arith.constant 0 : i32
    %c0_i32_1 = arith.constant 0 : i32
    return %c0_i32, %arg0, %c0_i32_0 : i32, i32, i32
  }
  func.func @transform_4(%arg0: i32) -> (i32, i32) {
    %c0_i32 = arith.constant 0 : i32
    %c0_i32_0 = arith.constant 0 : i32
    return %arg0, %c0_i32 : i32, i32
  }
}

</mosaic_0001>

<llo_original>
// kernel: macro_and_autoencoder_rollout.5
$region0: #{macro_and_autoencoder_rollout.5}
  #allocation0 [shape = 'u32[]', space=smem, size = 0x4, offset = 0x4, fixed_abs, tag = 'smem constant byte address 0x4 - core index']
  #allocation1 [shape = 'u32[144,128]{1,0:T(1,128)}', space=vmem, size = 0x12000, scoped, tag = 'internal scratch']
  %s0 = inlined_call_operand.vmem [shape: f32[16,32], index: 0, kind: input, shape index: {}]
  %s1 = inlined_call_operand.vmem [shape: f32[32,32], index: 1, kind: input, shape index: {}]
  %s2 = inlined_call_operand.vmem [shape: f32[1,32], index: 2, kind: input, shape index: {}]
  %s3 = inlined_call_operand.vmem [shape: f32[32,1024], index: 3, kind: input, shape index: {}]
  %s4 = inlined_call_operand.vmem [shape: f32[1,1024], index: 4, kind: input, shape index: {}]
  %s5 = inlined_call_operand.vmem [shape: f32[16,1024], index: 5, kind: output, shape index: {}]
  %s6 = sld [smem:[#allocation0]]
  $region30: #{macro_and_autoencoder_rollout.5} parent=0
    _
  %s8 = ssub.s32 1, %s6
  %s9 = scalar_select 0, %s8, %s6
  // Predicated region
  $region2: #{macro_and_autoencoder_rollout.5} parent=0 // pred_check
    _
  $region3: #{macro_and_autoencoder_rollout.5} parent=0 // pred_check_branch
    %11 = sbr.rel (0) target = $region5
  $region4: #{macro_and_autoencoder_rollout.5} parent=0 // pred_region
    _
  $region5: #{macro_and_autoencoder_rollout.5} parent=0 // pred_fallthru
    _
  // Predicated region
  $region6: #{macro_and_autoencoder_rollout.5} parent=0 // pred_check
    _
  $region7: #{macro_and_autoencoder_rollout.5} parent=0 // pred_check_branch
    %13 = sbr.rel (0) target = $region9
  $region8: #{macro_and_autoencoder_rollout.5} parent=0 // pred_region
    _
  $region9: #{macro_and_autoencoder_rollout.5} parent=0 // pred_fallthru
    _
  // Predicated region
  $region10: #{macro_and_autoencoder_rollout.5} parent=0 // pred_check
    _
  $region11: #{macro_and_autoencoder_rollout.5} parent=0 // pred_check_branch
    %15 = sbr.rel (0) target = $region13
  $region12: #{macro_and_autoencoder_rollout.5} parent=0 // pred_region
    _
  $region13: #{macro_and_autoencoder_rollout.5} parent=0 // pred_fallthru
    _
  // Predicated region
  $region14: #{macro_and_autoencoder_rollout.5} parent=0 // pred_check
    _
  $region15: #{macro_and_autoencoder_rollout.5} parent=0 // pred_check_branch
    %17 = sbr.rel (0) target = $region17
  $region16: #{macro_and_autoencoder_rollout.5} parent=0 // pred_region
    _
  $region17: #{macro_and_autoencoder_rollout.5} parent=0 // pred_fallthru
    _
  // Predicated region
  $region18: #{macro_and_autoencoder_rollout.5} parent=0 // pred_check
    _
  $region19: #{macro_and_autoencoder_rollout.5} parent=0 // pred_check_branch
    %19 = sbr.rel (0) target = $region21
  $region20: #{macro_and_autoencoder_rollout.5} parent=0 // pred_region
    _
  $region21: #{macro_and_autoencoder_rollout.5} parent=0 // pred_fallthru
    _
  %v20 = vld [vmem:[%s0] sm:$0xff]
  %v21 = vld [vmem:[%s0 + $0x8] sm:$0xff]
  %v22 = vld [vmem:[%s1] sm:$0xff]
  %v23 = vld [vmem:[%s1 + $0x8] sm:$0xff]
  %v24 = vld [vmem:[%s1 + $0x10] sm:$0xff]
  %v25 = vld [vmem:[%s1 + $0x18] sm:$0xff]
  %v26 = vld [vmem:[%s2] sm:$0x1]
  %v28 = vlaneseq
  %v29 = vshrl.u32 %v28, 7
  %v30 = vsub.s32 0, %v29
  %v31 = vrot.slane %v26, %v30
  %vm33 = vcmask 261120
  %v35 = vsel %vm33, %v20, 0
  %v38 = vsel %vm33, %v21, 0
  %40 = vmatprep.subr.mxu0 0.0
  %41 = vmatpush1.msra.mxu0 0.0
  %42 = vmatprep.subr.mxu0 0.0
  %43 = vmatpush1.msra.mxu0 0.0
  %44 = vmatprep.subr.mxu0 0.0
  %45 = vmatpush1.msra.mxu0 0.0
  %46 = vmatprep.subr.mxu0 0.0
  %47 = vmatpush1.msra.mxu0 0.0
  %48 = vmatprep.subr.mxu0 0.0
  %49 = vmatpush1.msra.mxu0 0.0
  %50 = vmatprep.subr.mxu0 0.0
  %51 = vmatpush1.msra.mxu0 0.0
  %52 = vmatprep.subr.mxu0 0.0
  %53 = vmatpush1.msra.mxu0 0.0
  %54 = vmatprep.subr.mxu0 0.0
  %55 = vmatpush1.msra.mxu0 0.0
  %56 = vmatprep.subr.mxu0 0.0
  %57 = vmatpush1.msra.mxu0 0.0
  %58 = vmatprep.subr.mxu0 0.0
  %59 = vmatpush1.msra.mxu0 0.0
  %60 = vmatprep.subr.mxu0 0.0
  %61 = vmatpush1.msra.mxu0 0.0
  %62 = vmatprep.subr.mxu0 0.0
  %63 = vmatpush1.msra.mxu0 0.0
  %64 = vmatprep.subr.mxu0 0.0
  %65 = vmatpush1.msra.mxu0 %v25
  %66 = vmatprep.subr.mxu0 0.0
  %67 = vmatpush1.msra.mxu0 %v24
  %68 = vmatprep.subr.mxu0 0.0
  %69 = vmatpush1.msra.mxu0 %v23
  %70 = vmatprep.subr.mxu0 0.0
  %71 = vmatpush1.msra.mxu0 %v22
  %72 = vmatprep.subr.mxu0 0.0
  %73 = vmatpush2.msra.mxu0 0.0
  %74 = vmatprep.subr.mxu0 0.0
  %75 = vmatpush2.msra.mxu0 0.0
  %76 = vmatprep.subr.mxu0 0.0
  %77 = vmatpush2.msra.mxu0 0.0
  %78 = vmatprep.subr.mxu0 0.0
  %79 = vmatpush2.msra.mxu0 0.0
  %80 = vmatprep.subr.mxu0 0.0
  %81 = vmatpush2.msra.mxu0 0.0
  %82 = vmatprep.subr.mxu0 0.0
  %83 = vmatpush2.msra.mxu0 0.0
  %84 = vmatprep.subr.mxu0 0.0
  %85 = vmatpush2.msra.mxu0 0.0
  %86 = vmatprep.subr.mxu0 0.0
  %87 = vmatpush2.msra.mxu0 0.0
  %88 = vmatprep.subr.mxu0 0.0
  %89 = vmatpush2.msra.mxu0 0.0
  %90 = vmatprep.subr.mxu0 0.0
  %91 = vmatpush2.msra.mxu0 0.0
  %92 = vmatprep.subr.mxu0 0.0
  %93 = vmatpush2.msra.mxu0 0.0
  %94 = vmatprep.subr.mxu0 0.0
  %95 = vmatpush2.msra.mxu0 0.0
  %96 = vmatprep.subr.mxu0 0.0
  %97 = vmatpush2.msra.mxu0 0.0
  %98 = vmatprep.subr.mxu0 0.0
  %99 = vmatpush2.msra.mxu0 0.0
  %100 = vmatprep.subr.mxu0 0.0
  %101 = vmatpush2.msra.mxu0 0.0
  %102 = vmatprep.subr.mxu0 0.0
  %103 = vmatpush2.msra.mxu0 0.0
  %104 = vmatprep.mubr.f32.mxu0 0.0
  %105 = vmatmul.mubr.f32.gmra.mxu0 %v35
  %v106 = vpop.f32.mrf.mxu0
  %v107 = vadd.f32 %v31, %v106
  %v108 = vpop.f32.mrf.mxu0
  %109 = vmatprep.mubr.f32.mxu0 0.0
  %110 = vmatmul.mubr.f32.gmra.mxu0 %v38
  %v111 = vpop.f32.mrf.mxu0
  %v112 = vadd.f32 %v31, %v111
  %v113 = vpop.f32.mrf.mxu0
  %114 = vdwg.mxu0
  %v115 = vld [vmem:[%s3] sm:$0xff]
  %v116 = vld [vmem:[%s3 + $0x8] sm:$0xff]
  %v117 = vld [vmem:[%s3 + $0x10] sm:$0xff]
  %v118 = vld [vmem:[%s3 + $0x18] sm:$0xff]
  %v119 = vld [vmem:[%s3 + $0x20] sm:$0xff]
  %v120 = vld [vmem:[%s3 + $0x28] sm:$0xff]
  %v121 = vld [vmem:[%s3 + $0x30] sm:$0xff]
  %v122 = vld [vmem:[%s3 + $0x38] sm:$0xff]
  %v123 = vld [vmem:[%s3 + $0x40] sm:$0xff]
  %v124 = vld [vmem:[%s3 + $0x48] sm:$0xff]
  %v125 = vld [vmem:[%s3 + $0x50] sm:$0xff]
  %v126 = vld [vmem:[%s3 + $0x58] sm:$0xff]
  %v127 = vld [vmem:[%s3 + $0x60] sm:$0xff]
  %v128 = vld [vmem:[%s3 + $0x68] sm:$0xff]
  %v129 = vld [vmem:[%s3 + $0x70] sm:$0xff]
  %v130 = vld [vmem:[%s3 + $0x78] sm:$0xff]
  %v131 = vld [vmem:[%s3 + $0x80] sm:$0xff]
  %v132 = vld [vmem:[%s3 + $0x88] sm:$0xff]
  %v133 = vld [vmem:[%s3 + $0x90] sm:$0xff]
  %v134 = vld [vmem:[%s3 + $0x98] sm:$0xff]
  %v135 = vld [vmem:[%s3 + $0xa0] sm:$0xff]
  %v136 = vld [vmem:[%s3 + $0xa8] sm:$0xff]
  %v137 = vld [vmem:[%s3 + $0xb0] sm:$0xff]
  %v138 = vld [vmem:[%s3 + $0xb8] sm:$0xff]
  %v139 = vld [vmem:[%s3 + $0xc0] sm:$0xff]
  %v140 = vld [vmem:[%s3 + $0xc8] sm:$0xff]
  %v141 = vld [vmem:[%s3 + $0xd0] sm:$0xff]
  %v142 = vld [vmem:[%s3 + $0xd8] sm:$0xff]
  %v143 = vld [vmem:[%s3 + $0xe0] sm:$0xff]
  %v144 = vld [vmem:[%s3 + $0xe8] sm:$0xff]
  %v145 = vld [vmem:[%s3 + $0xf0] sm:$0xff]
  %v146 = vld [vmem:[%s3 + $0xf8] sm:$0xff]
  %v147 = vld [vmem:[%s4] sm:$0xff]
  %v149 = vlaneseq
  %v150 = vshrl.u32 %v149, 7
  %v151 = vsub.s32 0, %v150
  %v152 = vrot.slane %v147, %v151
  %v153 = vlaneseq
  %v154 = vshrl.u32 %v153, 7
  %v155 = vsub.s32 1, %v154
  %v156 = vrot.slane %v147, %v155
  %v157 = vlaneseq
  %v158 = vshrl.u32 %v157, 7
  %v159 = vsub.s32 2, %v158
  %v160 = vrot.slane %v147, %v159
  %v161 = vlaneseq
  %v162 = vshrl.u32 %v161, 7
  %v163 = vsub.s32 3, %v162
  %v164 = vrot.slane %v147, %v163
  %v165 = vlaneseq
  %v166 = vshrl.u32 %v165, 7
  %v167 = vsub.s32 4, %v166
  %v168 = vrot.slane %v147, %v167
  %v169 = vlaneseq
  %v170 = vshrl.u32 %v169, 7
  %v171 = vsub.s32 5, %v170
  %v172 = vrot.slane %v147, %v171
  %v173 = vlaneseq
  %v174 = vshrl.u32 %v173, 7
  %v175 = vsub.s32 6, %v174
  %v176 = vrot.slane %v147, %v175
  %v177 = vlaneseq
  %v178 = vshrl.u32 %v177, 7
  %v179 = vsub.s32 7, %v178
  %v180 = vrot.slane %v147, %v179
  %v190 = vsel %vm33, %v107, 0
  %v193 = vsel %vm33, %v112, 0
  %195 = vmatprep.subr.mxu0 0.0
  %196 = vmatpush1.msra.mxu0 0.0
  %197 = vmatprep.subr.mxu0 0.0
  %198 = vmatpush1.msra.mxu0 0.0
  %199 = vmatprep.subr.mxu0 0.0
  %200 = vmatpush1.msra.mxu0 0.0
  %201 = vmatprep.subr.mxu0 0.0
  %202 = vmatpush1.msra.mxu0 0.0
  %203 = vmatprep.subr.mxu0 0.0
  %204 = vmatpush1.msra.mxu0 0.0
  %205 = vmatprep.subr.mxu0 0.0
  %206 = vmatpush1.msra.mxu0 0.0
  %207 = vmatprep.subr.mxu0 0.0
  %208 = vmatpush1.msra.mxu0 0.0
  %209 = vmatprep.subr.mxu0 0.0
  %210 = vmatpush1.msra.mxu0 0.0
  %211 = vmatprep.subr.mxu0 0.0
  %212 = vmatpush1.msra.mxu0 0.0
  %213 = vmatprep.subr.mxu0 0.0
  %214 = vmatpush1.msra.mxu0 0.0
  %215 = vmatprep.subr.mxu0 0.0
  %216 = vmatpush1.msra.mxu0 0.0
  %217 = vmatprep.subr.mxu0 0.0
  %218 = vmatpush1.msra.mxu0 0.0
  %219 = vmatprep.subr.mxu0 %v140
  %220 = vmatpush1.msra.mxu0 %v139
  %221 = vmatprep.subr.mxu0 %v132
  %222 = vmatpush1.msra.mxu0 %v131
  %223 = vmatprep.subr.mxu0 %v124
  %224 = vmatpush1.msra.mxu0 %v123
  %225 = vmatprep.subr.mxu0 %v116
  %226 = vmatpush1.msra.mxu0 %v115
  %227 = vmatprep.subr.mxu0 0.0
  %228 = vmatpush2.msra.mxu0 0.0
  %229 = vmatprep.subr.mxu0 0.0
  %230 = vmatpush2.msra.mxu0 0.0
  %231 = vmatprep.subr.mxu0 0.0
  %232 = vmatpush2.msra.mxu0 0.0
  %233 = vmatprep.subr.mxu0 0.0
  %234 = vmatpush2.msra.mxu0 0.0
  %235 = vmatprep.subr.mxu0 0.0
  %236 = vmatpush2.msra.mxu0 0.0
  %237 = vmatprep.subr.mxu0 0.0
  %238 = vmatpush2.msra.mxu0 0.0
  %239 = vmatprep.subr.mxu0 0.0
  %240 = vmatpush2.msra.mxu0 0.0
  %241 = vmatprep.subr.mxu0 0.0
  %242 = vmatpush2.msra.mxu0 0.0
  %243 = vmatprep.subr.mxu0 0.0
  %244 = vmatpush2.msra.mxu0 0.0
  %245 = vmatprep.subr.mxu0 0.0
  %246 = vmatpush2.msra.mxu0 0.0
  %247 = vmatprep.subr.mxu0 0.0
  %248 = vmatpush2.msra.mxu0 0.0
  %249 = vmatprep.subr.mxu0 0.0
  %250 = vmatpush2.msra.mxu0 0.0
  %251 = vmatprep.subr.mxu0 0.0
  %252 = vmatpush2.msra.mxu0 0.0
  %253 = vmatprep.subr.mxu0 0.0
  %254 = vmatpush2.msra.mxu0 0.0
  %255 = vmatprep.subr.mxu0 0.0
  %256 = vmatpush2.msra.mxu0 0.0
  %257 = vmatprep.subr.mxu0 0.0
  %258 = vmatpush2.msra.mxu0 0.0
  %259 = vmatprep.mubr.f32.mxu0 0.0
  %260 = vmatmul.mubr.f32.gmra.mxu0 %v190
  %v261 = vpop.f32.mrf.mxu0
  %v262 = vadd.f32 %v152, %v261
  %v263 = vpop.f32.mrf.mxu0
  %v264 = vadd.f32 %v156, %v263
  %265 = vmatprep.mubr.f32.mxu0 0.0
  %266 = vmatmul.mubr.f32.gmra.mxu0 %v193
  %v267 = vpop.f32.mrf.mxu0
  %v268 = vadd.f32 %v152, %v267
  %v269 = vpop.f32.mrf.mxu0
  %v270 = vadd.f32 %v156, %v269
  %271 = vdwg.mxu0
  %272 = vmatprep.subr.mxu0 0.0
  %273 = vmatpush1.msra.mxu0 0.0
  %274 = vmatprep.subr.mxu0 0.0
  %275 = vmatpush1.msra.mxu0 0.0
  %276 = vmatprep.subr.mxu0 0.0
  %277 = vmatpush1.msra.mxu0 0.0
  %278 = vmatprep.subr.mxu0 0.0
  %279 = vmatpush1.msra.mxu0 0.0
  %280 = vmatprep.subr.mxu0 0.0
  %281 = vmatpush1.msra.mxu0 0.0
  %282 = vmatprep.subr.mxu0 0.0
  %283 = vmatpush1.msra.mxu0 0.0
  %284 = vmatprep.subr.mxu0 0.0
  %285 = vmatpush1.msra.mxu0 0.0
  %286 = vmatprep.subr.mxu0 0.0
  %287 = vmatpush1.msra.mxu0 0.0
  %288 = vmatprep.subr.mxu0 0.0
  %289 = vmatpush1.msra.mxu0 0.0
  %290 = vmatprep.subr.mxu0 0.0
  %291 = vmatpush1.msra.mxu0 0.0
  %292 = vmatprep.subr.mxu0 0.0
  %293 = vmatpush1.msra.mxu0 0.0
  %294 = vmatprep.subr.mxu0 0.0
  %295 = vmatpush1.msra.mxu0 0.0
  %296 = vmatprep.subr.mxu0 %v142
  %297 = vmatpush1.msra.mxu0 %v141
  %298 = vmatprep.subr.mxu0 %v134
  %299 = vmatpush1.msra.mxu0 %v133
  %300 = vmatprep.subr.mxu0 %v126
  %301 = vmatpush1.msra.mxu0 %v125
  %302 = vmatprep.subr.mxu0 %v118
  %303 = vmatpush1.msra.mxu0 %v117
  %304 = vmatprep.subr.mxu0 0.0
  %305 = vmatpush2.msra.mxu0 0.0
  %306 = vmatprep.subr.mxu0 0.0
  %307 = vmatpush2.msra.mxu0 0.0
  %308 = vmatprep.subr.mxu0 0.0
  %309 = vmatpush2.msra.mxu0 0.0
  %310 = vmatprep.subr.mxu0 0.0
  %311 = vmatpush2.msra.mxu0 0.0
  %312 = vmatprep.subr.mxu0 0.0
  %313 = vmatpush2.msra.mxu0 0.0
  %314 = vmatprep.subr.mxu0 0.0
  %315 = vmatpush2.msra.mxu0 0.0
  %316 = vmatprep.subr.mxu0 0.0
  %317 = vmatpush2.msra.mxu0 0.0
  %318 = vmatprep.subr.mxu0 0.0
  %319 = vmatpush2.msra.mxu0 0.0
  %320 = vmatprep.subr.mxu0 0.0
  %321 = vmatpush2.msra.mxu0 0.0
  %322 = vmatprep.subr.mxu0 0.0
  %323 = vmatpush2.msra.mxu0 0.0
  %324 = vmatprep.subr.mxu0 0.0
  %325 = vmatpush2.msra.mxu0 0.0
  %326 = vmatprep.subr.mxu0 0.0
  %327 = vmatpush2.msra.mxu0 0.0
  %328 = vmatprep.subr.mxu0 0.0
  %329 = vmatpush2.msra.mxu0 0.0
  %330 = vmatprep.subr.mxu0 0.0
  %331 = vmatpush2.msra.mxu0 0.0
  %332 = vmatprep.subr.mxu0 0.0
  %333 = vmatpush2.msra.mxu0 0.0
  %334 = vmatprep.subr.mxu0 0.0
  %335 = vmatpush2.msra.mxu0 0.0
  %336 = vmatprep.mubr.f32.mxu0 0.0
  %337 = vmatmul.mubr.f32.gmra.mxu0 %v190
  %v338 = vpop.f32.mrf.mxu0
  %v339 = vadd.f32 %v160, %v338
  %v340 = vpop.f32.mrf.mxu0
  %v341 = vadd.f32 %v164, %v340
  %342 = vmatprep.mubr.f32.mxu0 0.0
  %343 = vmatmul.mubr.f32.gmra.mxu0 %v193
  %v344 = vpop.f32.mrf.mxu0
  %v345 = vadd.f32 %v160, %v344
  %v346 = vpop.f32.mrf.mxu0
  %v347 = vadd.f32 %v164, %v346
  %348 = vdwg.mxu0
  %349 = vmatprep.subr.mxu0 0.0
  %350 = vmatpush1.msra.mxu0 0.0
  %351 = vmatprep.subr.mxu0 0.0
  %352 = vmatpush1.msra.mxu0 0.0
  %353 = vmatprep.subr.mxu0 0.0
  %354 = vmatpush1.msra.mxu0 0.0
  %355 = vmatprep.subr.mxu0 0.0
  %356 = vmatpush1.msra.mxu0 0.0
  %357 = vmatprep.subr.mxu0 0.0
  %358 = vmatpush1.msra.mxu0 0.0
  %359 = vmatprep.subr.mxu0 0.0
  %360 = vmatpush1.msra.mxu0 0.0
  %361 = vmatprep.subr.mxu0 0.0
  %362 = vmatpush1.msra.mxu0 0.0
  %363 = vmatprep.subr.mxu0 0.0
  %364 = vmatpush1.msra.mxu0 0.0
  %365 = vmatprep.subr.mxu0 0.0
  %366 = vmatpush1.msra.mxu0 0.0
  %367 = vmatprep.subr.mxu0 0.0
  %368 = vmatpush1.msra.mxu0 0.0
  %369 = vmatprep.subr.mxu0 0.0
  %370 = vmatpush1.msra.mxu0 0.0
  %371 = vmatprep.subr.mxu0 0.0
  %372 = vmatpush1.msra.mxu0 0.0
  %373 = vmatprep.subr.mxu0 %v144
  %374 = vmatpush1.msra.mxu0 %v143
  %375 = vmatprep.subr.mxu0 %v136
  %376 = vmatpush1.msra.mxu0 %v135
  %377 = vmatprep.subr.mxu0 %v128
  %378 = vmatpush1.msra.mxu0 %v127
  %379 = vmatprep.subr.mxu0 %v120
  %380 = vmatpush1.msra.mxu0 %v119
  %381 = vmatprep.subr.mxu0 0.0
  %382 = vmatpush2.msra.mxu0 0.0
  %383 = vmatprep.subr.mxu0 0.0
  %384 = vmatpush2.msra.mxu0 0.0
  %385 = vmatprep.subr.mxu0 0.0
  %386 = vmatpush2.msra.mxu0 0.0
  %387 = vmatprep.subr.mxu0 0.0
  %388 = vmatpush2.msra.mxu0 0.0
  %389 = vmatprep.subr.mxu0 0.0
  %390 = vmatpush2.msra.mxu0 0.0
  %391 = vmatprep.subr.mxu0 0.0
  %392 = vmatpush2.msra.mxu0 0.0
  %393 = vmatprep.subr.mxu0 0.0
  %394 = vmatpush2.msra.mxu0 0.0
  %395 = vmatprep.subr.mxu0 0.0
  %396 = vmatpush2.msra.mxu0 0.0
  %397 = vmatprep.subr.mxu0 0.0
  %398 = vmatpush2.msra.mxu0 0.0
  %399 = vmatprep.subr.mxu0 0.0
  %400 = vmatpush2.msra.mxu0 0.0
  %401 = vmatprep.subr.mxu0 0.0
  %402 = vmatpush2.msra.mxu0 0.0
  %403 = vmatprep.subr.mxu0 0.0
  %404 = vmatpush2.msra.mxu0 0.0
  %405 = vmatprep.subr.mxu0 0.0
  %406 = vmatpush2.msra.mxu0 0.0
  %407 = vmatprep.subr.mxu0 0.0
  %408 = vmatpush2.msra.mxu0 0.0
  %409 = vmatprep.subr.mxu0 0.0
  %410 = vmatpush2.msra.mxu0 0.0
  %411 = vmatprep.subr.mxu0 0.0
  %412 = vmatpush2.msra.mxu0 0.0
  %413 = vmatprep.mubr.f32.mxu0 0.0
  %414 = vmatmul.mubr.f32.gmra.mxu0 %v190
  %v415 = vpop.f32.mrf.mxu0
  %v416 = vadd.f32 %v168, %v415
  %v417 = vpop.f32.mrf.mxu0
  %v418 = vadd.f32 %v172, %v417
  %419 = vmatprep.mubr.f32.mxu0 0.0
  %420 = vmatmul.mubr.f32.gmra.mxu0 %v193
  %v421 = vpop.f32.mrf.mxu0
  %v422 = vadd.f32 %v168, %v421
  %v423 = vpop.f32.mrf.mxu0
  %v424 = vadd.f32 %v172, %v423
  %425 = vdwg.mxu0
  %426 = vmatprep.subr.mxu0 0.0
  %427 = vmatpush1.msra.mxu0 0.0
  %428 = vmatprep.subr.mxu0 0.0
  %429 = vmatpush1.msra.mxu0 0.0
  %430 = vmatprep.subr.mxu0 0.0
  %431 = vmatpush1.msra.mxu0 0.0
  %432 = vmatprep.subr.mxu0 0.0
  %433 = vmatpush1.msra.mxu0 0.0
  %434 = vmatprep.subr.mxu0 0.0
  %435 = vmatpush1.msra.mxu0 0.0
  %436 = vmatprep.subr.mxu0 0.0
  %437 = vmatpush1.msra.mxu0 0.0
  %438 = vmatprep.subr.mxu0 0.0
  %439 = vmatpush1.msra.mxu0 0.0
  %440 = vmatprep.subr.mxu0 0.0
  %441 = vmatpush1.msra.mxu0 0.0
  %442 = vmatprep.subr.mxu0 0.0
  %443 = vmatpush1.msra.mxu0 0.0
  %444 = vmatprep.subr.mxu0 0.0
  %445 = vmatpush1.msra.mxu0 0.0
  %446 = vmatprep.subr.mxu0 0.0
  %447 = vmatpush1.msra.mxu0 0.0
  %448 = vmatprep.subr.mxu0 0.0
  %449 = vmatpush1.msra.mxu0 0.0
  %450 = vmatprep.subr.mxu0 %v146
  %451 = vmatpush1.msra.mxu0 %v145
  %452 = vmatprep.subr.mxu0 %v138
  %453 = vmatpush1.msra.mxu0 %v137
  %454 = vmatprep.subr.mxu0 %v130
  %455 = vmatpush1.msra.mxu0 %v129
  %456 = vmatprep.subr.mxu0 %v122
  %457 = vmatpush1.msra.mxu0 %v121
  %458 = vmatprep.subr.mxu0 0.0
  %459 = vmatpush2.msra.mxu0 0.0
  %460 = vmatprep.subr.mxu0 0.0
  %461 = vmatpush2.msra.mxu0 0.0
  %462 = vmatprep.subr.mxu0 0.0
  %463 = vmatpush2.msra.mxu0 0.0
  %464 = vmatprep.subr.mxu0 0.0
  %465 = vmatpush2.msra.mxu0 0.0
  %466 = vmatprep.subr.mxu0 0.0
  %467 = vmatpush2.msra.mxu0 0.0
  %468 = vmatprep.subr.mxu0 0.0
  %469 = vmatpush2.msra.mxu0 0.0
  %470 = vmatprep.subr.mxu0 0.0
  %471 = vmatpush2.msra.mxu0 0.0
  %472 = vmatprep.subr.mxu0 0.0
  %473 = vmatpush2.msra.mxu0 0.0
  %474 = vmatprep.subr.mxu0 0.0
  %475 = vmatpush2.msra.mxu0 0.0
  %476 = vmatprep.subr.mxu0 0.0
  %477 = vmatpush2.msra.mxu0 0.0
  %478 = vmatprep.subr.mxu0 0.0
  %479 = vmatpush2.msra.mxu0 0.0
  %480 = vmatprep.subr.mxu0 0.0
  %481 = vmatpush2.msra.mxu0 0.0
  %482 = vmatprep.subr.mxu0 0.0
  %483 = vmatpush2.msra.mxu0 0.0
  %484 = vmatprep.subr.mxu0 0.0
  %485 = vmatpush2.msra.mxu0 0.0
  %486 = vmatprep.subr.mxu0 0.0
  %487 = vmatpush2.msra.mxu0 0.0
  %488 = vmatprep.subr.mxu0 0.0
  %489 = vmatpush2.msra.mxu0 0.0
  %490 = vmatprep.mubr.f32.mxu0 0.0
  %491 = vmatmul.mubr.f32.gmra.mxu0 %v190
  %v492 = vpop.f32.mrf.mxu0
  %v493 = vadd.f32 %v176, %v492
  %v494 = vpop.f32.mrf.mxu0
  %v495 = vadd.f32 %v180, %v494
  %496 = vmatprep.mubr.f32.mxu0 0.0
  %497 = vmatmul.mubr.f32.gmra.mxu0 %v193
  %v498 = vpop.f32.mrf.mxu0
  %v499 = vadd.f32 %v176, %v498
  %v500 = vpop.f32.mrf.mxu0
  %v501 = vadd.f32 %v180, %v500
  %502 = vdwg.mxu0
  %503 = vst [vmem:[%s5] sm:$0xff] %v262
  %504 = vst [vmem:[%s5 + $0x8] sm:$0xff] %v264
  %505 = vst [vmem:[%s5 + $0x10] sm:$0xff] %v339
  %506 = vst [vmem:[%s5 + $0x18] sm:$0xff] %v341
  %507 = vst [vmem:[%s5 + $0x20] sm:$0xff] %v416
  %508 = vst [vmem:[%s5 + $0x28] sm:$0xff] %v418
  %509 = vst [vmem:[%s5 + $0x30] sm:$0xff] %v493
  %510 = vst [vmem:[%s5 + $0x38] sm:$0xff] %v495
  %511 = vst [vmem:[%s5 + $0x40] sm:$0xff] %v268
  %512 = vst [vmem:[%s5 + $0x48] sm:$0xff] %v270
  %513 = vst [vmem:[%s5 + $0x50] sm:$0xff] %v345
  %514 = vst [vmem:[%s5 + $0x58] sm:$0xff] %v347
  %515 = vst [vmem:[%s5 + $0x60] sm:$0xff] %v422
  %516 = vst [vmem:[%s5 + $0x68] sm:$0xff] %v424
  %517 = vst [vmem:[%s5 + $0x70] sm:$0xff] %v499
  %518 = vst [vmem:[%s5 + $0x78] sm:$0xff] %v501
  // Predicated region
  $region22: #{macro_and_autoencoder_rollout.5} parent=0 // pred_check
    _
  $region23: #{macro_and_autoencoder_rollout.5} parent=0 // pred_check_branch
    %520 = sbr.rel (0) target = $region25
  $region24: #{macro_and_autoencoder_rollout.5} parent=0 // pred_region
    _
  $region25: #{macro_and_autoencoder_rollout.5} parent=0 // pred_fallthru
    _
  // Predicated region
  $region26: #{macro_and_autoencoder_rollout.5} parent=0 // pred_check
    _
  $region27: #{macro_and_autoencoder_rollout.5} parent=0 // pred_check_branch
    %522 = sbr.rel (0) target = $region29
  $region28: #{macro_and_autoencoder_rollout.5} parent=0 // pred_region
    _
  $region29: #{macro_and_autoencoder_rollout.5} parent=0 // pred_fallthru
    _

// kernel: macro_and_autoencoder_rollout.3
$region0: #{macro_and_autoencoder_rollout.3}
  #allocation0 [shape = 'u32[]', space=smem, size = 0x4, offset = 0x4, fixed_abs, tag = 'smem constant byte address 0x4 - core index']
  #allocation1 [shape = 'u32[144,128]{1,0:T(1,128)}', space=vmem, size = 0x12000, scoped, tag = 'internal scratch']
  %s0 = inlined_call_operand.vmem [shape: f32[16,1024], index: 0, kind: input, shape index: {}]
  %s1 = inlined_call_operand.vmem [shape: f32[16,2], index: 1, kind: input, shape index: {}]
  %s2 = inlined_call_operand.vmem [shape: f32[1024,32], index: 2, kind: input, shape index: {}]
  %s3 = inlined_call_operand.vmem [shape: f32[1,32], index: 3, kind: input, shape index: {}]
  %s4 = inlined_call_operand.vmem [shape: f32[32,32], index: 4, kind: input, shape index: {}]
  %s5 = inlined_call_operand.vmem [shape: f32[2,32], index: 5, kind: input, shape index: {}]
  %s6 = inlined_call_operand.vmem [shape: f32[1,32], index: 6, kind: input, shape index: {}]
  %s7 = inlined_call_operand.vmem [shape: f32[16,32], index: 7, kind: output, shape index: {}]
  %s8 = sld [smem:[#allocation0]]
  $region38: #{macro_and_autoencoder_rollout.3} parent=0
    _
  %s10 = ssub.s32 1, %s8
  %s11 = scalar_select 0, %s10, %s8
  // Predicated region
  $region2: #{macro_and_autoencoder_rollout.3} parent=0 // pred_check
    _
  $region3: #{macro_and_autoencoder_rollout.3} parent=0 // pred_check_branch
    %13 = sbr.rel (0) target = $region5
  $region4: #{macro_and_autoencoder_rollout.3} parent=0 // pred_region
    _
  $region5: #{macro_and_autoencoder_rollout.3} parent=0 // pred_fallthru
    _
  // Predicated region
  $region6: #{macro_and_autoencoder_rollout.3} parent=0 // pred_check
    _
  $region7: #{macro_and_autoencoder_rollout.3} parent=0 // pred_check_branch
    %15 = sbr.rel (0) target = $region9
  $region8: #{macro_and_autoencoder_rollout.3} parent=0 // pred_region
    _
  $region9: #{macro_and_autoencoder_rollout.3} parent=0 // pred_fallthru
    _
  // Predicated region
  $region10: #{macro_and_autoencoder_rollout.3} parent=0 // pred_check
    _
  $region11: #{macro_and_autoencoder_rollout.3} parent=0 // pred_check_branch
    %17 = sbr.rel (0) target = $region13
  $region12: #{macro_and_autoencoder_rollout.3} parent=0 // pred_region
    _
  $region13: #{macro_and_autoencoder_rollout.3} parent=0 // pred_fallthru
    _
  // Predicated region
  $region14: #{macro_and_autoencoder_rollout.3} parent=0 // pred_check
    _
  $region15: #{macro_and_autoencoder_rollout.3} parent=0 // pred_check_branch
    %19 = sbr.rel (0) target = $region17
  $region16: #{macro_and_autoencoder_rollout.3} parent=0 // pred_region
    _
  $region17: #{macro_and_autoencoder_rollout.3} parent=0 // pred_fallthru
    _
  // Predicated region
  $region18: #{macro_and_autoencoder_rollout.3} parent=0 // pred_check
    _
  $region19: #{macro_and_autoencoder_rollout.3} parent=0 // pred_check_branch
    %21 = sbr.rel (0) target = $region21
  $region20: #{macro_and_autoencoder_rollout.3} parent=0 // pred_region
    _
  $region21: #{macro_and_autoencoder_rollout.3} parent=0 // pred_fallthru
    _
  // Predicated region
  $region22: #{macro_and_autoencoder_rollout.3} parent=0 // pred_check
    _
  $region23: #{macro_and_autoencoder_rollout.3} parent=0 // pred_check_branch
    %23 = sbr.rel (0) target = $region25
  $region24: #{macro_and_autoencoder_rollout.3} parent=0 // pred_region
    _
  $region25: #{macro_and_autoencoder_rollout.3} parent=0 // pred_fallthru
    _
  // Predicated region
  $region26: #{macro_and_autoencoder_rollout.3} parent=0 // pred_check
    _
  $region27: #{macro_and_autoencoder_rollout.3} parent=0 // pred_check_branch
    %25 = sbr.rel (0) target = $region29
  $region28: #{macro_and_autoencoder_rollout.3} parent=0 // pred_region
    _
  $region29: #{macro_and_autoencoder_rollout.3} parent=0 // pred_fallthru
    _
  %v26 = vld [vmem:[%s0] sm:$0xff]
  %v27 = vld [vmem:[%s0 + $0x8] sm:$0xff]
  %v28 = vld [vmem:[%s0 + $0x10] sm:$0xff]
  %v29 = vld [vmem:[%s0 + $0x18] sm:$0xff]
  %v30 = vld [vmem:[%s0 + $0x20] sm:$0xff]
  %v31 = vld [vmem:[%s0 + $0x28] sm:$0xff]
  %v32 = vld [vmem:[%s0 + $0x30] sm:$0xff]
  %v33 = vld [vmem:[%s0 + $0x38] sm:$0xff]
  %v34 = vld [vmem:[%s0 + $0x40] sm:$0xff]
  %v35 = vld [vmem:[%s0 + $0x48] sm:$0xff]
  %v36 = vld [vmem:[%s0 + $0x50] sm:$0xff]
  %v37 = vld [vmem:[%s0 + $0x58] sm:$0xff]
  %v38 = vld [vmem:[%s0 + $0x60] sm:$0xff]
  %v39 = vld [vmem:[%s0 + $0x68] sm:$0xff]
  %v40 = vld [vmem:[%s0 + $0x70] sm:$0xff]
  %v41 = vld [vmem:[%s0 + $0x78] sm:$0xff]
  %v42 = vld [vmem:[%s2] sm:$0xff]
  %v43 = vld [vmem:[%s2 + $0x8] sm:$0xff]
  %v44 = vld [vmem:[%s2 + $0x10] sm:$0xff]
  %v45 = vld [vmem:[%s2 + $0x18] sm:$0xff]
  %v46 = vld [vmem:[%s2 + $0x20] sm:$0xff]
  %v47 = vld [vmem:[%s2 + $0x28] sm:$0xff]
  %v48 = vld [vmem:[%s2 + $0x30] sm:$0xff]
  %v49 = vld [vmem:[%s2 + $0x38] sm:$0xff]
  %v50 = vld [vmem:[%s2 + $0x40] sm:$0xff]
  %v51 = vld [vmem:[%s2 + $0x48] sm:$0xff]
  %v52 = vld [vmem:[%s2 + $0x50] sm:$0xff]
  %v53 = vld [vmem:[%s2 + $0x58] sm:$0xff]
  %v54 = vld [vmem:[%s2 + $0x60] sm:$0xff]
  %v55 = vld [vmem:[%s2 + $0x68] sm:$0xff]
  %v56 = vld [vmem:[%s2 + $0x70] sm:$0xff]
  %v57 = vld [vmem:[%s2 + $0x78] sm:$0xff]
  %v58 = vld [vmem:[%s2 + $0x80] sm:$0xff]
  %v59 = vld [vmem:[%s2 + $0x88] sm:$0xff]
  %v60 = vld [vmem:[%s2 + $0x90] sm:$0xff]
  %v61 = vld [vmem:[%s2 + $0x98] sm:$0xff]
  %v62 = vld [vmem:[%s2 + $0xa0] sm:$0xff]
  %v63 = vld [vmem:[%s2 + $0xa8] sm:$0xff]
  %v64 = vld [vmem:[%s2 + $0xb0] sm:$0xff]
  %v65 = vld [vmem:[%s2 + $0xb8] sm:$0xff]
  %v66 = vld [vmem:[%s2 + $0xc0] sm:$0xff]
  %v67 = vld [vmem:[%s2 + $0xc8] sm:$0xff]
  %v68 = vld [vmem:[%s2 + $0xd0] sm:$0xff]
  %v69 = vld [vmem:[%s2 + $0xd8] sm:$0xff]
  %v70 = vld [vmem:[%s2 + $0xe0] sm:$0xff]
  %v71 = vld [vmem:[%s2 + $0xe8] sm:$0xff]
  %v72 = vld [vmem:[%s2 + $0xf0] sm:$0xff]
  %v73 = vld [vmem:[%s2 + $0xf8] sm:$0xff]
  %v74 = vld [vmem:[%s2 + $0x100] sm:$0xff]
  %v75 = vld [vmem:[%s2 + $0x108] sm:$0xff]
  %v76 = vld [vmem:[%s2 + $0x110] sm:$0xff]
  %v77 = vld [vmem:[%s2 + $0x118] sm:$0xff]
  %v78 = vld [vmem:[%s2 + $0x120] sm:$0xff]
  %v79 = vld [vmem:[%s2 + $0x128] sm:$0xff]
  %v80 = vld [vmem:[%s2 + $0x130] sm:$0xff]
  %v81 = vld [vmem:[%s2 + $0x138] sm:$0xff]
  %v82 = vld [vmem:[%s2 + $0x140] sm:$0xff]
  %v83 = vld [vmem:[%s2 + $0x148] sm:$0xff]
  %v84 = vld [vmem:[%s2 + $0x150] sm:$0xff]
  %v85 = vld [vmem:[%s2 + $0x158] sm:$0xff]
  %v86 = vld [vmem:[%s2 + $0x160] sm:$0xff]
  %v87 = vld [vmem:[%s2 + $0x168] sm:$0xff]
  %v88 = vld [vmem:[%s2 + $0x170] sm:$0xff]
  %v89 = vld [vmem:[%s2 + $0x178] sm:$0xff]
  %v90 = vld [vmem:[%s2 + $0x180] sm:$0xff]
  %v91 = vld [vmem:[%s2 + $0x188] sm:$0xff]
  %v92 = vld [vmem:[%s2 + $0x190] sm:$0xff]
  %v93 = vld [vmem:[%s2 + $0x198] sm:$0xff]
  %v94 = vld [vmem:[%s2 + $0x1a0] sm:$0xff]
  %v95 = vld [vmem:[%s2 + $0x1a8] sm:$0xff]
  %v96 = vld [vmem:[%s2 + $0x1b0] sm:$0xff]
  %v97 = vld [vmem:[%s2 + $0x1b8] sm:$0xff]
  %v98 = vld [vmem:[%s2 + $0x1c0] sm:$0xff]
  %v99 = vld [vmem:[%s2 + $0x1c8] sm:$0xff]
  %v100 = vld [vmem:[%s2 + $0x1d0] sm:$0xff]
  %v101 = vld [vmem:[%s2 + $0x1d8] sm:$0xff]
  %v102 = vld [vmem:[%s2 + $0x1e0] sm:$0xff]
  %v103 = vld [vmem:[%s2 + $0x1e8] sm:$0xff]
  %v104 = vld [vmem:[%s2 + $0x1f0] sm:$0xff]
  %v105 = vld [vmem:[%s2 + $0x1f8] sm:$0xff]
  %v106 = vld [vmem:[%s2 + $0x200] sm:$0xff]
  %v107 = vld [vmem:[%s2 + $0x208] sm:$0xff]
  %v108 = vld [vmem:[%s2 + $0x210] sm:$0xff]
  %v109 = vld [vmem:[%s2 + $0x218] sm:$0xff]
  %v110 = vld [vmem:[%s2 + $0x220] sm:$0xff]
  %v111 = vld [vmem:[%s2 + $0x228] sm:$0xff]
  %v112 = vld [vmem:[%s2 + $0x230] sm:$0xff]
  %v113 = vld [vmem:[%s2 + $0x238] sm:$0xff]
  %v114 = vld [vmem:[%s2 + $0x240] sm:$0xff]
  %v115 = vld [vmem:[%s2 + $0x248] sm:$0xff]
  %v116 = vld [vmem:[%s2 + $0x250] sm:$0xff]
  %v117 = vld [vmem:[%s2 + $0x258] sm:$0xff]
  %v118 = vld [vmem:[%s2 + $0x260] sm:$0xff]
  %v119 = vld [vmem:[%s2 + $0x268] sm:$0xff]
  %v120 = vld [vmem:[%s2 + $0x270] sm:$0xff]
  %v121 = vld [vmem:[%s2 + $0x278] sm:$0xff]
  %v122 = vld [vmem:[%s2 + $0x280] sm:$0xff]
  %v123 = vld [vmem:[%s2 + $0x288] sm:$0xff]
  %v124 = vld [vmem:[%s2 + $0x290] sm:$0xff]
  %v125 = vld [vmem:[%s2 + $0x298] sm:$0xff]
  %v126 = vld [vmem:[%s2 + $0x2a0] sm:$0xff]
  %v127 = vld [vmem:[%s2 + $0x2a8] sm:$0xff]
  %v128 = vld [vmem:[%s2 + $0x2b0] sm:$0xff]
  %v129 = vld [vmem:[%s2 + $0x2b8] sm:$0xff]
  %v130 = vld [vmem:[%s2 + $0x2c0] sm:$0xff]
  %v131 = vld [vmem:[%s2 + $0x2c8] sm:$0xff]
  %v132 = vld [vmem:[%s2 + $0x2d0] sm:$0xff]
  %v133 = vld [vmem:[%s2 + $0x2d8] sm:$0xff]
  %v134 = vld [vmem:[%s2 + $0x2e0] sm:$0xff]
  %v135 = vld [vmem:[%s2 + $0x2e8] sm:$0xff]
  %v136 = vld [vmem:[%s2 + $0x2f0] sm:$0xff]
  %v137 = vld [vmem:[%s2 + $0x2f8] sm:$0xff]
  %v138 = vld [vmem:[%s2 + $0x300] sm:$0xff]
  %v139 = vld [vmem:[%s2 + $0x308] sm:$0xff]
  %v140 = vld [vmem:[%s2 + $0x310] sm:$0xff]
  %v141 = vld [vmem:[%s2 + $0x318] sm:$0xff]
  %v142 = vld [vmem:[%s2 + $0x320] sm:$0xff]
  %v143 = vld [vmem:[%s2 + $0x328] sm:$0xff]
  %v144 = vld [vmem:[%s2 + $0x330] sm:$0xff]
  %v145 = vld [vmem:[%s2 + $0x338] sm:$0xff]
  %v146 = vld [vmem:[%s2 + $0x340] sm:$0xff]
  %v147 = vld [vmem:[%s2 + $0x348] sm:$0xff]
  %v148 = vld [vmem:[%s2 + $0x350] sm:$0xff]
  %v149 = vld [vmem:[%s2 + $0x358] sm:$0xff]
  %v150 = vld [vmem:[%s2 + $0x360] sm:$0xff]
  %v151 = vld [vmem:[%s2 + $0x368] sm:$0xff]
  %v152 = vld [vmem:[%s2 + $0x370] sm:$0xff]
  %v153 = vld [vmem:[%s2 + $0x378] sm:$0xff]
  %v154 = vld [vmem:[%s2 + $0x380] sm:$0xff]
  %v155 = vld [vmem:[%s2 + $0x388] sm:$0xff]
  %v156 = vld [vmem:[%s2 + $0x390] sm:$0xff]
  %v157 = vld [vmem:[%s2 + $0x398] sm:$0xff]
  %v158 = vld [vmem:[%s2 + $0x3a0] sm:$0xff]
  %v159 = vld [vmem:[%s2 + $0x3a8] sm:$0xff]
  %v160 = vld [vmem:[%s2 + $0x3b0] sm:$0xff]
  %v161 = vld [vmem:[%s2 + $0x3b8] sm:$0xff]
  %v162 = vld [vmem:[%s2 + $0x3c0] sm:$0xff]
  %v163 = vld [vmem:[%s2 + $0x3c8] sm:$0xff]
  %v164 = vld [vmem:[%s2 + $0x3d0] sm:$0xff]
  %v165 = vld [vmem:[%s2 + $0x3d8] sm:$0xff]
  %v166 = vld [vmem:[%s2 + $0x3e0] sm:$0xff]
  %v167 = vld [vmem:[%s2 + $0x3e8] sm:$0xff]
  %v168 = vld [vmem:[%s2 + $0x3f0] sm:$0xff]
  %v169 = vld [vmem:[%s2 + $0x3f8] sm:$0xff]
  %v170 = vld [vmem:[%s3] sm:$0x1]
  %v172 = vlaneseq
  %v173 = vshrl.u32 %v172, 7
  %v174 = vsub.s32 0, %v173
  %v175 = vrot.slane %v170, %v174
  %177 = vmatprep.subr.mxu0 0.0
  %178 = vmatpush1.msra.mxu0 %v57
  %179 = vmatprep.subr.mxu0 0.0
  %180 = vmatpush1.msra.mxu0 %v56
  %181 = vmatprep.subr.mxu0 0.0
  %182 = vmatpush1.msra.mxu0 %v55
  %183 = vmatprep.subr.mxu0 0.0
  %184 = vmatpush1.msra.mxu0 %v54
  %185 = vmatprep.subr.mxu0 0.0
  %186 = vmatpush1.msra.mxu0 %v53
  %187 = vmatprep.subr.mxu0 0.0
  %188 = vmatpush1.msra.mxu0 %v52
  %189 = vmatprep.subr.mxu0 0.0
  %190 = vmatpush1.msra.mxu0 %v51
  %191 = vmatprep.subr.mxu0 0.0
  %192 = vmatpush1.msra.mxu0 %v50
  %193 = vmatprep.subr.mxu0 0.0
  %194 = vmatpush1.msra.mxu0 %v49
  %195 = vmatprep.subr.mxu0 0.0
  %196 = vmatpush1.msra.mxu0 %v48
  %197 = vmatprep.subr.mxu0 0.0
  %198 = vmatpush1.msra.mxu0 %v47
  %199 = vmatprep.subr.mxu0 0.0
  %200 = vmatpush1.msra.mxu0 %v46
  %201 = vmatprep.subr.mxu0 0.0
  %202 = vmatpush1.msra.mxu0 %v45
  %203 = vmatprep.subr.mxu0 0.0
  %204 = vmatpush1.msra.mxu0 %v44
  %205 = vmatprep.subr.mxu0 0.0
  %206 = vmatpush1.msra.mxu0 %v43
  %207 = vmatprep.subr.mxu0 0.0
  %208 = vmatpush1.msra.mxu0 %v42
  %209 = vmatprep.subr.mxu0 0.0
  %210 = vmatpush2.msra.mxu0 %v73
  %211 = vmatprep.subr.mxu0 0.0
  %212 = vmatpush2.msra.mxu0 %v72
  %213 = vmatprep.subr.mxu0 0.0
  %214 = vmatpush2.msra.mxu0 %v71
  %215 = vmatprep.subr.mxu0 0.0
  %216 = vmatpush2.msra.mxu0 %v70
  %217 = vmatprep.subr.mxu0 0.0
  %218 = vmatpush2.msra.mxu0 %v69
  %219 = vmatprep.subr.mxu0 0.0
  %220 = vmatpush2.msra.mxu0 %v68
  %221 = vmatprep.subr.mxu0 0.0
  %222 = vmatpush2.msra.mxu0 %v67
  %223 = vmatprep.subr.mxu0 0.0
  %224 = vmatpush2.msra.mxu0 %v66
  %225 = vmatprep.subr.mxu0 0.0
  %226 = vmatpush2.msra.mxu0 %v65
  %227 = vmatprep.subr.mxu0 0.0
  %228 = vmatpush2.msra.mxu0 %v64
  %229 = vmatprep.subr.mxu0 0.0
  %230 = vmatpush2.msra.mxu0 %v63
  %231 = vmatprep.subr.mxu0 0.0
  %232 = vmatpush2.msra.mxu0 %v62
  %233 = vmatprep.subr.mxu0 0.0
  %234 = vmatpush2.msra.mxu0 %v61
  %235 = vmatprep.subr.mxu0 0.0
  %236 = vmatpush2.msra.mxu0 %v60
  %237 = vmatprep.subr.mxu0 0.0
  %238 = vmatpush2.msra.mxu0 %v59
  %239 = vmatprep.subr.mxu0 0.0
  %240 = vmatpush2.msra.mxu0 %v58
  %241 = vmatprep.mubr.f32.mxu0 %v27
  %242 = vmatmul.mubr.f32.gmra.mxu0 %v26
  %v243 = vpop.f32.mrf.mxu0
  %v244 = vadd.f32 %v175, %v243
  %v245 = vpop.f32.mrf.mxu0
  %246 = vmatprep.mubr.f32.mxu0 %v35
  %247 = vmatmul.mubr.f32.gmra.mxu0 %v34
  %v248 = vpop.f32.mrf.mxu0
  %v249 = vadd.f32 %v175, %v248
  %v250 = vpop.f32.mrf.mxu0
  %251 = vdwg.mxu0
  %252 = vmatprep.subr.mxu0 0.0
  %253 = vmatpush1.msra.mxu0 %v89
  %254 = vmatprep.subr.mxu0 0.0
  %255 = vmatpush1.msra.mxu0 %v88
  %256 = vmatprep.subr.mxu0 0.0
  %257 = vmatpush1.msra.mxu0 %v87
  %258 = vmatprep.subr.mxu0 0.0
  %259 = vmatpush1.msra.mxu0 %v86
  %260 = vmatprep.subr.mxu0 0.0
  %261 = vmatpush1.msra.mxu0 %v85
  %262 = vmatprep.subr.mxu0 0.0
  %263 = vmatpush1.msra.mxu0 %v84
  %264 = vmatprep.subr.mxu0 0.0
  %265 = vmatpush1.msra.mxu0 %v83
  %266 = vmatprep.subr.mxu0 0.0
  %267 = vmatpush1.msra.mxu0 %v82
  %268 = vmatprep.subr.mxu0 0.0
  %269 = vmatpush1.msra.mxu0 %v81
  %270 = vmatprep.subr.mxu0 0.0
  %271 = vmatpush1.msra.mxu0 %v80
  %272 = vmatprep.subr.mxu0 0.0
  %273 = vmatpush1.msra.mxu0 %v79
  %274 = vmatprep.subr.mxu0 0.0
  %275 = vmatpush1.msra.mxu0 %v78
  %276 = vmatprep.subr.mxu0 0.0
  %277 = vmatpush1.msra.mxu0 %v77
  %278 = vmatprep.subr.mxu0 0.0
  %279 = vmatpush1.msra.mxu0 %v76
  %280 = vmatprep.subr.mxu0 0.0
  %281 = vmatpush1.msra.mxu0 %v75
  %282 = vmatprep.subr.mxu0 0.0
  %283 = vmatpush1.msra.mxu0 %v74
  %284 = vmatprep.subr.mxu0 0.0
  %285 = vmatpush2.msra.mxu0 %v105
  %286 = vmatprep.subr.mxu0 0.0
  %287 = vmatpush2.msra.mxu0 %v104
  %288 = vmatprep.subr.mxu0 0.0
  %289 = vmatpush2.msra.mxu0 %v103
  %290 = vmatprep.subr.mxu0 0.0
  %291 = vmatpush2.msra.mxu0 %v102
  %292 = vmatprep.subr.mxu0 0.0
  %293 = vmatpush2.msra.mxu0 %v101
  %294 = vmatprep.subr.mxu0 0.0
  %295 = vmatpush2.msra.mxu0 %v100
  %296 = vmatprep.subr.mxu0 0.0
  %297 = vmatpush2.msra.mxu0 %v99
  %298 = vmatprep.subr.mxu0 0.0
  %299 = vmatpush2.msra.mxu0 %v98
  %300 = vmatprep.subr.mxu0 0.0
  %301 = vmatpush2.msra.mxu0 %v97
  %302 = vmatprep.subr.mxu0 0.0
  %303 = vmatpush2.msra.mxu0 %v96
  %304 = vmatprep.subr.mxu0 0.0
  %305 = vmatpush2.msra.mxu0 %v95
  %306 = vmatprep.subr.mxu0 0.0
  %307 = vmatpush2.msra.mxu0 %v94
  %308 = vmatprep.subr.mxu0 0.0
  %309 = vmatpush2.msra.mxu0 %v93
  %310 = vmatprep.subr.mxu0 0.0
  %311 = vmatpush2.msra.mxu0 %v92
  %312 = vmatprep.subr.mxu0 0.0
  %313 = vmatpush2.msra.mxu0 %v91
  %314 = vmatprep.subr.mxu0 0.0
  %315 = vmatpush2.msra.mxu0 %v90
  %316 = vmatprep.mubr.f32.mxu0 %v29
  %317 = vmatmul.mubr.f32.gmra.mxu0 %v28
  %v318 = vpop.f32.mrf.mxu0
  %v319 = vadd.f32 %v244, %v318
  %v320 = vpop.f32.mrf.mxu0
  %321 = vmatprep.mubr.f32.mxu0 %v37
  %322 = vmatmul.mubr.f32.gmra.mxu0 %v36
  %v323 = vpop.f32.mrf.mxu0
  %v324 = vadd.f32 %v249, %v323
  %v325 = vpop.f32.mrf.mxu0
  %326 = vdwg.mxu0
  %327 = vmatprep.subr.mxu0 0.0
  %328 = vmatpush1.msra.mxu0 %v121
  %329 = vmatprep.subr.mxu0 0.0
  %330 = vmatpush1.msra.mxu0 %v120
  %331 = vmatprep.subr.mxu0 0.0
  %332 = vmatpush1.msra.mxu0 %v119
  %333 = vmatprep.subr.mxu0 0.0
  %334 = vmatpush1.msra.mxu0 %v118
  %335 = vmatprep.subr.mxu0 0.0
  %336 = vmatpush1.msra.mxu0 %v117
  %337 = vmatprep.subr.mxu0 0.0
  %338 = vmatpush1.msra.mxu0 %v116
  %339 = vmatprep.subr.mxu0 0.0
  %340 = vmatpush1.msra.mxu0 %v115
  %341 = vmatprep.subr.mxu0 0.0
  %342 = vmatpush1.msra.mxu0 %v114
  %343 = vmatprep.subr.mxu0 0.0
  %344 = vmatpush1.msra.mxu0 %v113
  %345 = vmatprep.subr.mxu0 0.0
  %346 = vmatpush1.msra.mxu0 %v112
  %347 = vmatprep.subr.mxu0 0.0
  %348 = vmatpush1.msra.mxu0 %v111
  %349 = vmatprep.subr.mxu0 0.0
  %350 = vmatpush1.msra.mxu0 %v110
  %351 = vmatprep.subr.mxu0 0.0
  %352 = vmatpush1.msra.mxu0 %v109
  %353 = vmatprep.subr.mxu0 0.0
  %354 = vmatpush1.msra.mxu0 %v108
  %355 = vmatprep.subr.mxu0 0.0
  %356 = vmatpush1.msra.mxu0 %v107
  %357 = vmatprep.subr.mxu0 0.0
  %358 = vmatpush1.msra.mxu0 %v106
  %359 = vmatprep.subr.mxu0 0.0
  %360 = vmatpush2.msra.mxu0 %v137
  %361 = vmatprep.subr.mxu0 0.0
  %362 = vmatpush2.msra.mxu0 %v136
  %363 = vmatprep.subr.mxu0 0.0
  %364 = vmatpush2.msra.mxu0 %v135
  %365 = vmatprep.subr.mxu0 0.0
  %366 = vmatpush2.msra.mxu0 %v134
  %367 = vmatprep.subr.mxu0 0.0
  %368 = vmatpush2.msra.mxu0 %v133
  %369 = vmatprep.subr.mxu0 0.0
  %370 = vmatpush2.msra.mxu0 %v132
  %371 = vmatprep.subr.mxu0 0.0
  %372 = vmatpush2.msra.mxu0 %v131
  %373 = vmatprep.subr.mxu0 0.0
  %374 = vmatpush2.msra.mxu0 %v130
  %375 = vmatprep.subr.mxu0 0.0
  %376 = vmatpush2.msra.mxu0 %v129
  %377 = vmatprep.subr.mxu0 0.0
  %378 = vmatpush2.msra.mxu0 %v128
  %379 = vmatprep.subr.mxu0 0.0
  %380 = vmatpush2.msra.mxu0 %v127
  %381 = vmatprep.subr.mxu0 0.0
  %382 = vmatpush2.msra.mxu0 %v126
  %383 = vmatprep.subr.mxu0 0.0
  %384 = vmatpush2.msra.mxu0 %v125
  %385 = vmatprep.subr.mxu0 0.0
  %386 = vmatpush2.msra.mxu0 %v124
  %387 = vmatprep.subr.mxu0 0.0
  %388 = vmatpush2.msra.mxu0 %v123
  %389 = vmatprep.subr.mxu0 0.0
  %390 = vmatpush2.msra.mxu0 %v122
  %391 = vmatprep.mubr.f32.mxu0 %v31
  %392 = vmatmul.mubr.f32.gmra.mxu0 %v30
  %v393 = vpop.f32.mrf.mxu0
  %v394 = vadd.f32 %v319, %v393
  %v395 = vpop.f32.mrf.mxu0
  %396 = vmatprep.mubr.f32.mxu0 %v39
  %397 = vmatmul.mubr.f32.gmra.mxu0 %v38
  %v398 = vpop.f32.mrf.mxu0
  %v399 = vadd.f32 %v324, %v398
  %v400 = vpop.f32.mrf.mxu0
  %401 = vdwg.mxu0
  %402 = vmatprep.subr.mxu0 0.0
  %403 = vmatpush1.msra.mxu0 %v153
  %404 = vmatprep.subr.mxu0 0.0
  %405 = vmatpush1.msra.mxu0 %v152
  %406 = vmatprep.subr.mxu0 0.0
  %407 = vmatpush1.msra.mxu0 %v151
  %408 = vmatprep.subr.mxu0 0.0
  %409 = vmatpush1.msra.mxu0 %v150
  %410 = vmatprep.subr.mxu0 0.0
  %411 = vmatpush1.msra.mxu0 %v149
  %412 = vmatprep.subr.mxu0 0.0
  %413 = vmatpush1.msra.mxu0 %v148
  %414 = vmatprep.subr.mxu0 0.0
  %415 = vmatpush1.msra.mxu0 %v147
  %416 = vmatprep.subr.mxu0 0.0
  %417 = vmatpush1.msra.mxu0 %v146
  %418 = vmatprep.subr.mxu0 0.0
  %419 = vmatpush1.msra.mxu0 %v145
  %420 = vmatprep.subr.mxu0 0.0
  %421 = vmatpush1.msra.mxu0 %v144
  %422 = vmatprep.subr.mxu0 0.0
  %423 = vmatpush1.msra.mxu0 %v143
  %424 = vmatprep.subr.mxu0 0.0
  %425 = vmatpush1.msra.mxu0 %v142
  %426 = vmatprep.subr.mxu0 0.0
  %427 = vmatpush1.msra.mxu0 %v141
  %428 = vmatprep.subr.mxu0 0.0
  %429 = vmatpush1.msra.mxu0 %v140
  %430 = vmatprep.subr.mxu0 0.0
  %431 = vmatpush1.msra.mxu0 %v139
  %432 = vmatprep.subr.mxu0 0.0
  %433 = vmatpush1.msra.mxu0 %v138
  %434 = vmatprep.subr.mxu0 0.0
  %435 = vmatpush2.msra.mxu0 %v169
  %436 = vmatprep.subr.mxu0 0.0
  %437 = vmatpush2.msra.mxu0 %v168
  %438 = vmatprep.subr.mxu0 0.0
  %439 = vmatpush2.msra.mxu0 %v167
  %440 = vmatprep.subr.mxu0 0.0
  %441 = vmatpush2.msra.mxu0 %v166
  %442 = vmatprep.subr.mxu0 0.0
  %443 = vmatpush2.msra.mxu0 %v165
  %444 = vmatprep.subr.mxu0 0.0
  %445 = vmatpush2.msra.mxu0 %v164
  %446 = vmatprep.subr.mxu0 0.0
  %447 = vmatpush2.msra.mxu0 %v163
  %448 = vmatprep.subr.mxu0 0.0
  %449 = vmatpush2.msra.mxu0 %v162
  %450 = vmatprep.subr.mxu0 0.0
  %451 = vmatpush2.msra.mxu0 %v161
  %452 = vmatprep.subr.mxu0 0.0
  %453 = vmatpush2.msra.mxu0 %v160
  %454 = vmatprep.subr.mxu0 0.0
  %455 = vmatpush2.msra.mxu0 %v159
  %456 = vmatprep.subr.mxu0 0.0
  %457 = vmatpush2.msra.mxu0 %v158
  %458 = vmatprep.subr.mxu0 0.0
  %459 = vmatpush2.msra.mxu0 %v157
  %460 = vmatprep.subr.mxu0 0.0
  %461 = vmatpush2.msra.mxu0 %v156
  %462 = vmatprep.subr.mxu0 0.0
  %463 = vmatpush2.msra.mxu0 %v155
  %464 = vmatprep.subr.mxu0 0.0
  %465 = vmatpush2.msra.mxu0 %v154
  %466 = vmatprep.mubr.f32.mxu0 %v33
  %467 = vmatmul.mubr.f32.gmra.mxu0 %v32
  %v468 = vpop.f32.mrf.mxu0
  %v469 = vadd.f32 %v394, %v468
  %v470 = vpop.f32.mrf.mxu0
  %471 = vmatprep.mubr.f32.mxu0 %v41
  %472 = vmatmul.mubr.f32.gmra.mxu0 %v40
  %v473 = vpop.f32.mrf.mxu0
  %v474 = vadd.f32 %v399, %v473
  %v475 = vpop.f32.mrf.mxu0
  %476 = vdwg.mxu0
  %v477 = vtanh.pop %v469
  %v478 = vtanh.pop %v474
  %v479 = vld [vmem:[%s4] sm:$0xff]
  %v480 = vld [vmem:[%s4 + $0x8] sm:$0xff]
  %v481 = vld [vmem:[%s4 + $0x10] sm:$0xff]
  %v482 = vld [vmem:[%s4 + $0x18] sm:$0xff]
  %v483 = vld [vmem:[%s1] sm:$0xff]
  %v484 = vld [vmem:[%s1 + $0x8] sm:$0xff]
  %v485 = vld [vmem:[%s5] sm:$0x3]
  %vm486 = vcmask 15360
  %v488 = vsel %vm486, %v483, 0
  %v491 = vsel %vm486, %v484, 0
  %vm493 = vcmask 1041408
  %v495 = vsel %vm493, %v485, 0
  %497 = vmatprep.subr.mxu0 0.0
  %498 = vmatpush1.msra.mxu0 0.0
  %499 = vmatprep.subr.mxu0 0.0
  %500 = vmatpush1.msra.mxu0 0.0
  %501 = vmatprep.subr.mxu0 0.0
  %502 = vmatpush1.msra.mxu0 0.0
  %503 = vmatprep.subr.mxu0 0.0
  %504 = vmatpush1.msra.mxu0 0.0
  %505 = vmatprep.subr.mxu0 0.0
  %506 = vmatpush1.msra.mxu0 0.0
  %507 = vmatprep.subr.mxu0 0.0
  %508 = vmatpush1.msra.mxu0 0.0
  %509 = vmatprep.subr.mxu0 0.0
  %510 = vmatpush1.msra.mxu0 0.0
  %511 = vmatprep.subr.mxu0 0.0
  %512 = vmatpush1.msra.mxu0 0.0
  %513 = vmatprep.subr.mxu0 0.0
  %514 = vmatpush1.msra.mxu0 0.0
  %515 = vmatprep.subr.mxu0 0.0
  %516 = vmatpush1.msra.mxu0 0.0
  %517 = vmatprep.subr.mxu0 0.0
  %518 = vmatpush1.msra.mxu0 0.0
  %519 = vmatprep.subr.mxu0 0.0
  %520 = vmatpush1.msra.mxu0 0.0
  %521 = vmatprep.subr.mxu0 0.0
  %522 = vmatpush1.msra.mxu0 0.0
  %523 = vmatprep.subr.mxu0 0.0
  %524 = vmatpush1.msra.mxu0 0.0
  %525 = vmatprep.subr.mxu0 0.0
  %526 = vmatpush1.msra.mxu0 0.0
  %527 = vmatprep.subr.mxu0 0.0
  %528 = vmatpush1.msra.mxu0 %v495
  %529 = vmatprep.subr.mxu0 0.0
  %530 = vmatpush2.msra.mxu0 0.0
  %531 = vmatprep.subr.mxu0 0.0
  %532 = vmatpush2.msra.mxu0 0.0
  %533 = vmatprep.subr.mxu0 0.0
  %534 = vmatpush2.msra.mxu0 0.0
  %535 = vmatprep.subr.mxu0 0.0
  %536 = vmatpush2.msra.mxu0 0.0
  %537 = vmatprep.subr.mxu0 0.0
  %538 = vmatpush2.msra.mxu0 0.0
  %539 = vmatprep.subr.mxu0 0.0
  %540 = vmatpush2.msra.mxu0 0.0
  %541 = vmatprep.subr.mxu0 0.0
  %542 = vmatpush2.msra.mxu0 0.0
  %543 = vmatprep.subr.mxu0 0.0
  %544 = vmatpush2.msra.mxu0 0.0
  %545 = vmatprep.subr.mxu0 0.0
  %546 = vmatpush2.msra.mxu0 0.0
  %547 = vmatprep.subr.mxu0 0.0
  %548 = vmatpush2.msra.mxu0 0.0
  %549 = vmatprep.subr.mxu0 0.0
  %550 = vmatpush2.msra.mxu0 0.0
  %551 = vmatprep.subr.mxu0 0.0
  %552 = vmatpush2.msra.mxu0 0.0
  %553 = vmatprep.subr.mxu0 0.0
  %554 = vmatpush2.msra.mxu0 0.0
  %555 = vmatprep.subr.mxu0 0.0
  %556 = vmatpush2.msra.mxu0 0.0
  %557 = vmatprep.subr.mxu0 0.0
  %558 = vmatpush2.msra.mxu0 0.0
  %559 = vmatprep.subr.mxu0 0.0
  %560 = vmatpush2.msra.mxu0 0.0
  %561 = vmatprep.mubr.f32.mxu0 0.0
  %562 = vmatmul.mubr.f32.gmra.mxu0 %v488
  %v563 = vpop.f32.mrf.mxu0
  %v564 = vadd.f32 0.0, %v563
  %v565 = vpop.f32.mrf.mxu0
  %566 = vmatprep.mubr.f32.mxu0 0.0
  %567 = vmatmul.mubr.f32.gmra.mxu0 %v491
  %v568 = vpop.f32.mrf.mxu0
  %v569 = vadd.f32 0.0, %v568
  %v570 = vpop.f32.mrf.mxu0
  %571 = vdwg.mxu0
  %vm572 = vcmask 261120
  %v574 = vsel %vm572, %v477, 0
  %v577 = vsel %vm572, %v478, 0
  %579 = vmatprep.subr.mxu0 0.0
  %580 = vmatpush1.msra.mxu0 0.0
  %581 = vmatprep.subr.mxu0 0.0
  %582 = vmatpush1.msra.mxu0 0.0
  %583 = vmatprep.subr.mxu0 0.0
  %584 = vmatpush1.msra.mxu0 0.0
  %585 = vmatprep.subr.mxu0 0.0
  %586 = vmatpush1.msra.mxu0 0.0
  %587 = vmatprep.subr.mxu0 0.0
  %588 = vmatpush1.msra.mxu0 0.0
  %589 = vmatprep.subr.mxu0 0.0
  %590 = vmatpush1.msra.mxu0 0.0
  %591 = vmatprep.subr.mxu0 0.0
  %592 = vmatpush1.msra.mxu0 0.0
  %593 = vmatprep.subr.mxu0 0.0
  %594 = vmatpush1.msra.mxu0 0.0
  %595 = vmatprep.subr.mxu0 0.0
  %596 = vmatpush1.msra.mxu0 0.0
  %597 = vmatprep.subr.mxu0 0.0
  %598 = vmatpush1.msra.mxu0 0.0
  %599 = vmatprep.subr.mxu0 0.0
  %600 = vmatpush1.msra.mxu0 0.0
  %601 = vmatprep.subr.mxu0 0.0
  %602 = vmatpush1.msra.mxu0 0.0
  %603 = vmatprep.subr.mxu0 0.0
  %604 = vmatpush1.msra.mxu0 %v482
  %605 = vmatprep.subr.mxu0 0.0
  %606 = vmatpush1.msra.mxu0 %v481
  %607 = vmatprep.subr.mxu0 0.0
  %608 = vmatpush1.msra.mxu0 %v480
  %609 = vmatprep.subr.mxu0 0.0
  %610 = vmatpush1.msra.mxu0 %v479
  %611 = vmatprep.subr.mxu0 0.0
  %612 = vmatpush2.msra.mxu0 0.0
  %613 = vmatprep.subr.mxu0 0.0
  %614 = vmatpush2.msra.mxu0 0.0
  %615 = vmatprep.subr.mxu0 0.0
  %616 = vmatpush2.msra.mxu0 0.0
  %617 = vmatprep.subr.mxu0 0.0
  %618 = vmatpush2.msra.mxu0 0.0
  %619 = vmatprep.subr.mxu0 0.0
  %620 = vmatpush2.msra.mxu0 0.0
  %621 = vmatprep.subr.mxu0 0.0
  %622 = vmatpush2.msra.mxu0 0.0
  %623 = vmatprep.subr.mxu0 0.0
  %624 = vmatpush2.msra.mxu0 0.0
  %625 = vmatprep.subr.mxu0 0.0
  %626 = vmatpush2.msra.mxu0 0.0
  %627 = vmatprep.subr.mxu0 0.0
  %628 = vmatpush2.msra.mxu0 0.0
  %629 = vmatprep.subr.mxu0 0.0
  %630 = vmatpush2.msra.mxu0 0.0
  %631 = vmatprep.subr.mxu0 0.0
  %632 = vmatpush2.msra.mxu0 0.0
  %633 = vmatprep.subr.mxu0 0.0
  %634 = vmatpush2.msra.mxu0 0.0
  %635 = vmatprep.subr.mxu0 0.0
  %636 = vmatpush2.msra.mxu0 0.0
  %637 = vmatprep.subr.mxu0 0.0
  %638 = vmatpush2.msra.mxu0 0.0
  %639 = vmatprep.subr.mxu0 0.0
  %640 = vmatpush2.msra.mxu0 0.0
  %641 = vmatprep.subr.mxu0 0.0
  %642 = vmatpush2.msra.mxu0 0.0
  %643 = vmatprep.mubr.f32.mxu0 0.0
  %644 = vmatmul.mubr.f32.gmra.mxu0 %v574
  %v645 = vpop.f32.mrf.mxu0
  %v646 = vadd.f32 %v564, %v645
  %v647 = vpop.f32.mrf.mxu0
  %648 = vmatprep.mubr.f32.mxu0 0.0
  %649 = vmatmul.mubr.f32.gmra.mxu0 %v577
  %v650 = vpop.f32.mrf.mxu0
  %v651 = vadd.f32 %v569, %v650
  %v652 = vpop.f32.mrf.mxu0
  %653 = vdwg.mxu0
  %v654 = vld [vmem:[%s6] sm:$0x1]
  %v656 = vlaneseq
  %v657 = vshrl.u32 %v656, 7
  %v658 = vsub.s32 0, %v657
  %v659 = vrot.slane %v654, %v658
  %v661 = vadd.f32 %v646, %v659
  %v662 = vadd.f32 %v651, %v659
  %663 = vst.msk [vmem:[%s7] sm:$0xff] %vm572, %v661
  %664 = vst.msk [vmem:[%s7 + $0x8] sm:$0xff] %vm572, %v662
  // Predicated region
  $region30: #{macro_and_autoencoder_rollout.3} parent=0 // pred_check
    _
  $region31: #{macro_and_autoencoder_rollout.3} parent=0 // pred_check_branch
    %666 = sbr.rel (0) target = $region33
  $region32: #{macro_and_autoencoder_rollout.3} parent=0 // pred_region
    _
  $region33: #{macro_and_autoencoder_rollout.3} parent=0 // pred_fallthru
    _
  // Predicated region
  $region34: #{macro_and_autoencoder_rollout.3} parent=0 // pred_check
    _
  $region35: #{macro_and_autoencoder_rollout.3} parent=0 // pred_check_branch
    %668 = sbr.rel (0) target = $region37
  $region36: #{macro_and_autoencoder_rollout.3} parent=0 // pred_region
    _
  $region37: #{macro_and_autoencoder_rollout.3} parent=0 // pred_fallthru
    _

// kernel: macro_and_autoencoder_rollout.4
$region0: #{macro_and_autoencoder_rollout.4}
  #allocation0 [shape = 'u32[]', space=smem, size = 0x4, offset = 0x4, fixed_abs, tag = 'smem constant byte address 0x4 - core index']
  #allocation1 [shape = 'u32[144,128]{1,0:T(1,128)}', space=vmem, size = 0x12000, scoped, tag = 'internal scratch']
  %s0 = inlined_call_operand.vmem [shape: f32[8,2,32], index: 0, kind: input, shape index: {}]
  %s1 = inlined_call_operand.vmem [shape: f32[2,32], index: 1, kind: input, shape index: {}]
  %s2 = inlined_call_operand.vmem [shape: f32[32,32], index: 2, kind: input, shape index: {}]
  %s3 = inlined_call_operand.vmem [shape: f32[8,2,32], index: 3, kind: output, shape index: {0}]
  %s4 = inlined_call_operand.hbm [shape: f32[2,32], index: 4, kind: output, shape index: {1}]
  %5 = xla_tuple %s3, %s4
  %s6 = sld [smem:[#allocation0]]
  $region30: #{macro_and_autoencoder_rollout.4} parent=0
    _
  %s8 = ssub.s32 1, %s6
  %s9 = scalar_select 0, %s8, %s6
  $region1: #{macro_and_autoencoder_rollout.4} parent=0
    #allocation2 [shape = 'u8[1024]{0}', space=vmem, size = 0x400, scoped, tag = 'output window, operand 1, single buffered']
    #allocation3 [shape = 's32[1]{0}', space=sflag, size = 0x4, scoped, tag = 'scoped memory for macro_and_autoencoder_rollout.4']
    %10 = vsyncpa [#allocation3], 0
    // Predicated region
    $region2: #{macro_and_autoencoder_rollout.4} parent=1 // pred_check
      _
    $region3: #{macro_and_autoencoder_rollout.4} parent=1 // pred_check_branch
      %12 = sbr.rel (0) target = $region5
    $region4: #{macro_and_autoencoder_rollout.4} parent=1 // pred_region
      _
    $region5: #{macro_and_autoencoder_rollout.4} parent=1 // pred_fallthru
      _
    // Predicated region
    $region6: #{macro_and_autoencoder_rollout.4} parent=1 // pred_check
      _
    $region7: #{macro_and_autoencoder_rollout.4} parent=1 // pred_check_branch
      %14 = sbr.rel (0) target = $region9
    $region8: #{macro_and_autoencoder_rollout.4} parent=1 // pred_region
      _
    $region9: #{macro_and_autoencoder_rollout.4} parent=1 // pred_fallthru
      _
    // Predicated region
    $region10: #{macro_and_autoencoder_rollout.4} parent=1 // pred_check
      _
    $region11: #{macro_and_autoencoder_rollout.4} parent=1 // pred_check_branch
      %16 = sbr.rel (0) target = $region13
    $region12: #{macro_and_autoencoder_rollout.4} parent=1 // pred_region
      _
    $region13: #{macro_and_autoencoder_rollout.4} parent=1 // pred_fallthru
      _
    %v17 = vld [vmem:[%s2] sm:$0xff]
    %v18 = vld [vmem:[%s2 + $0x8] sm:$0xff]
    %v19 = vld [vmem:[%s2 + $0x10] sm:$0xff]
    %v20 = vld [vmem:[%s2 + $0x18] sm:$0xff]
    %v21 = vld [vmem:[%s1] sm:$0x3]
    %v22 = vld [vmem:[%s0] sm:$0x3]
    %vm23 = vcmask 261120
    %v25 = vsel %vm23, %v21, 0
    %27 = vmatprep.subr.mxu0 0.0
    %28 = vmatpush1.msra.mxu0 0.0
    %29 = vmatprep.subr.mxu0 0.0
    %30 = vmatpush1.msra.mxu0 0.0
    %31 = vmatprep.subr.mxu0 0.0
    %32 = vmatpush1.msra.mxu0 0.0
    %33 = vmatprep.subr.mxu0 0.0
    %34 = vmatpush1.msra.mxu0 0.0
    %35 = vmatprep.subr.mxu0 0.0
    %36 = vmatpush1.msra.mxu0 0.0
    %37 = vmatprep.subr.mxu0 0.0
    %38 = vmatpush1.msra.mxu0 0.0
    %39 = vmatprep.subr.mxu0 0.0
    %40 = vmatpush1.msra.mxu0 0.0
    %41 = vmatprep.subr.mxu0 0.0
    %42 = vmatpush1.msra.mxu0 0.0
    %43 = vmatprep.subr.mxu0 0.0
    %44 = vmatpush1.msra.mxu0 0.0
    %45 = vmatprep.subr.mxu0 0.0
    %46 = vmatpush1.msra.mxu0 0.0
    %47 = vmatprep.subr.mxu0 0.0
    %48 = vmatpush1.msra.mxu0 0.0
    %49 = vmatprep.subr.mxu0 0.0
    %50 = vmatpush1.msra.mxu0 0.0
    %51 = vmatprep.subr.mxu0 0.0
    %52 = vmatpush1.msra.mxu0 %v20
    %53 = vmatprep.subr.mxu0 0.0
    %54 = vmatpush1.msra.mxu0 %v19
    %55 = vmatprep.subr.mxu0 0.0
    %56 = vmatpush1.msra.mxu0 %v18
    %57 = vmatprep.subr.mxu0 0.0
    %58 = vmatpush1.msra.mxu0 %v17
    %59 = vmatprep.subr.mxu0 0.0
    %60 = vmatpush2.msra.mxu0 0.0
    %61 = vmatprep.subr.mxu0 0.0
    %62 = vmatpush2.msra.mxu0 0.0
    %63 = vmatprep.subr.mxu0 0.0
    %64 = vmatpush2.msra.mxu0 0.0
    %65 = vmatprep.subr.mxu0 0.0
    %66 = vmatpush2.msra.mxu0 0.0
    %67 = vmatprep.subr.mxu0 0.0
    %68 = vmatpush2.msra.mxu0 0.0
    %69 = vmatprep.subr.mxu0 0.0
    %70 = vmatpush2.msra.mxu0 0.0
    %71 = vmatprep.subr.mxu0 0.0
    %72 = vmatpush2.msra.mxu0 0.0
    %73 = vmatprep.subr.mxu0 0.0
    %74 = vmatpush2.msra.mxu0 0.0
    %75 = vmatprep.subr.mxu0 0.0
    %76 = vmatpush2.msra.mxu0 0.0
    %77 = vmatprep.subr.mxu0 0.0
    %78 = vmatpush2.msra.mxu0 0.0
    %79 = vmatprep.subr.mxu0 0.0
    %80 = vmatpush2.msra.mxu0 0.0
    %81 = vmatprep.subr.mxu0 0.0
    %82 = vmatpush2.msra.mxu0 0.0
    %83 = vmatprep.subr.mxu0 0.0
    %84 = vmatpush2.msra.mxu0 0.0
    %85 = vmatprep.subr.mxu0 0.0
    %86 = vmatpush2.msra.mxu0 0.0
    %87 = vmatprep.subr.mxu0 0.0
    %88 = vmatpush2.msra.mxu0 0.0
    %89 = vmatprep.subr.mxu0 0.0
    %90 = vmatpush2.msra.mxu0 0.0
    %91 = vmatprep.mubr.f32.mxu0 0.0
    %92 = vmatmul.mubr.f32.gmra.mxu0 %v25
    %v93 = vpop.f32.mrf.mxu0
    %v94 = vadd.f32 0.0, %v93
    %v95 = vpop.f32.mrf.mxu0
    %96 = vdwg.mxu0
    %v97 = vadd.f32 %v22, %v94
    %v98 = vtanh.pop %v97
    %vm99 = vcmask 254976
    %100 = vst.msk [vmem:[%s3] sm:$0x3] %vm99, %v98
    %s101 = scalar_lea.vmem %s0, 2
    %v102 = vld [vmem:[%s101] sm:$0x3]
    %v104 = vsel %vm23, %v98, 0
    %106 = vmatprep.subr.mxu0 0.0
    %107 = vmatpush1.msra.mxu0 0.0
    %108 = vmatprep.subr.mxu0 0.0
    %109 = vmatpush1.msra.mxu0 0.0
    %110 = vmatprep.subr.mxu0 0.0
    %111 = vmatpush1.msra.mxu0 0.0
    %112 = vmatprep.subr.mxu0 0.0
    %113 = vmatpush1.msra.mxu0 0.0
    %114 = vmatprep.subr.mxu0 0.0
    %115 = vmatpush1.msra.mxu0 0.0
    %116 = vmatprep.subr.mxu0 0.0
    %117 = vmatpush1.msra.mxu0 0.0
    %118 = vmatprep.subr.mxu0 0.0
    %119 = vmatpush1.msra.mxu0 0.0
    %120 = vmatprep.subr.mxu0 0.0
    %121 = vmatpush1.msra.mxu0 0.0
    %122 = vmatprep.subr.mxu0 0.0
    %123 = vmatpush1.msra.mxu0 0.0
    %124 = vmatprep.subr.mxu0 0.0
    %125 = vmatpush1.msra.mxu0 0.0
    %126 = vmatprep.subr.mxu0 0.0
    %127 = vmatpush1.msra.mxu0 0.0
    %128 = vmatprep.subr.mxu0 0.0
    %129 = vmatpush1.msra.mxu0 0.0
    %130 = vmatprep.subr.mxu0 0.0
    %131 = vmatpush1.msra.mxu0 %v20
    %132 = vmatprep.subr.mxu0 0.0
    %133 = vmatpush1.msra.mxu0 %v19
    %134 = vmatprep.subr.mxu0 0.0
    %135 = vmatpush1.msra.mxu0 %v18
    %136 = vmatprep.subr.mxu0 0.0
    %137 = vmatpush1.msra.mxu0 %v17
    %138 = vmatprep.subr.mxu0 0.0
    %139 = vmatpush2.msra.mxu0 0.0
    %140 = vmatprep.subr.mxu0 0.0
    %141 = vmatpush2.msra.mxu0 0.0
    %142 = vmatprep.subr.mxu0 0.0
    %143 = vmatpush2.msra.mxu0 0.0
    %144 = vmatprep.subr.mxu0 0.0
    %145 = vmatpush2.msra.mxu0 0.0
    %146 = vmatprep.subr.mxu0 0.0
    %147 = vmatpush2.msra.mxu0 0.0
    %148 = vmatprep.subr.mxu0 0.0
    %149 = vmatpush2.msra.mxu0 0.0
    %150 = vmatprep.subr.mxu0 0.0
    %151 = vmatpush2.msra.mxu0 0.0
    %152 = vmatprep.subr.mxu0 0.0
    %153 = vmatpush2.msra.mxu0 0.0
    %154 = vmatprep.subr.mxu0 0.0
    %155 = vmatpush2.msra.mxu0 0.0
    %156 = vmatprep.subr.mxu0 0.0
    %157 = vmatpush2.msra.mxu0 0.0
    %158 = vmatprep.subr.mxu0 0.0
    %159 = vmatpush2.msra.mxu0 0.0
    %160 = vmatprep.subr.mxu0 0.0
    %161 = vmatpush2.msra.mxu0 0.0
    %162 = vmatprep.subr.mxu0 0.0
    %163 = vmatpush2.msra.mxu0 0.0
    %164 = vmatprep.subr.mxu0 0.0
    %165 = vmatpush2.msra.mxu0 0.0
    %166 = vmatprep.subr.mxu0 0.0
    %167 = vmatpush2.msra.mxu0 0.0
    %168 = vmatprep.subr.mxu0 0.0
    %169 = vmatpush2.msra.mxu0 0.0
    %170 = vmatprep.mubr.f32.mxu0 0.0
    %171 = vmatmul.mubr.f32.gmra.mxu0 %v104
    %v172 = vpop.f32.mrf.mxu0
    %v173 = vadd.f32 0.0, %v172
    %v174 = vpop.f32.mrf.mxu0
    %175 = vdwg.mxu0
    %v176 = vadd.f32 %v102, %v173
    %v177 = vtanh.pop %v176
    %s178 = scalar_lea.vmem %s3, 2
    %179 = vst.msk [vmem:[%s178] sm:$0x3] %vm99, %v177
    %s180 = scalar_lea.vmem %s0, 4
    %v181 = vld [vmem:[%s180] sm:$0x3]
    %v183 = vsel %vm23, %v177, 0
    %185 = vmatprep.subr.mxu0 0.0
    %186 = vmatpush1.msra.mxu0 0.0
    %187 = vmatprep.subr.mxu0 0.0
    %188 = vmatpush1.msra.mxu0 0.0
    %189 = vmatprep.subr.mxu0 0.0
    %190 = vmatpush1.msra.mxu0 0.0
    %191 = vmatprep.subr.mxu0 0.0
    %192 = vmatpush1.msra.mxu0 0.0
    %193 = vmatprep.subr.mxu0 0.0
    %194 = vmatpush1.msra.mxu0 0.0
    %195 = vmatprep.subr.mxu0 0.0
    %196 = vmatpush1.msra.mxu0 0.0
    %197 = vmatprep.subr.mxu0 0.0
    %198 = vmatpush1.msra.mxu0 0.0
    %199 = vmatprep.subr.mxu0 0.0
    %200 = vmatpush1.msra.mxu0 0.0
    %201 = vmatprep.subr.mxu0 0.0
    %202 = vmatpush1.msra.mxu0 0.0
    %203 = vmatprep.subr.mxu0 0.0
    %204 = vmatpush1.msra.mxu0 0.0
    %205 = vmatprep.subr.mxu0 0.0
    %206 = vmatpush1.msra.mxu0 0.0
    %207 = vmatprep.subr.mxu0 0.0
    %208 = vmatpush1.msra.mxu0 0.0
    %209 = vmatprep.subr.mxu0 0.0
    %210 = vmatpush1.msra.mxu0 %v20
    %211 = vmatprep.subr.mxu0 0.0
    %212 = vmatpush1.msra.mxu0 %v19
    %213 = vmatprep.subr.mxu0 0.0
    %214 = vmatpush1.msra.mxu0 %v18
    %215 = vmatprep.subr.mxu0 0.0
    %216 = vmatpush1.msra.mxu0 %v17
    %217 = vmatprep.subr.mxu0 0.0
    %218 = vmatpush2.msra.mxu0 0.0
    %219 = vmatprep.subr.mxu0 0.0
    %220 = vmatpush2.msra.mxu0 0.0
    %221 = vmatprep.subr.mxu0 0.0
    %222 = vmatpush2.msra.mxu0 0.0
    %223 = vmatprep.subr.mxu0 0.0
    %224 = vmatpush2.msra.mxu0 0.0
    %225 = vmatprep.subr.mxu0 0.0
    %226 = vmatpush2.msra.mxu0 0.0
    %227 = vmatprep.subr.mxu0 0.0
    %228 = vmatpush2.msra.mxu0 0.0
    %229 = vmatprep.subr.mxu0 0.0
    %230 = vmatpush2.msra.mxu0 0.0
    %231 = vmatprep.subr.mxu0 0.0
    %232 = vmatpush2.msra.mxu0 0.0
    %233 = vmatprep.subr.mxu0 0.0
    %234 = vmatpush2.msra.mxu0 0.0
    %235 = vmatprep.subr.mxu0 0.0
    %236 = vmatpush2.msra.mxu0 0.0
    %237 = vmatprep.subr.mxu0 0.0
    %238 = vmatpush2.msra.mxu0 0.0
    %239 = vmatprep.subr.mxu0 0.0
    %240 = vmatpush2.msra.mxu0 0.0
    %241 = vmatprep.subr.mxu0 0.0
    %242 = vmatpush2.msra.mxu0 0.0
    %243 = vmatprep.subr.mxu0 0.0
    %244 = vmatpush2.msra.mxu0 0.0
    %245 = vmatprep.subr.mxu0 0.0
    %246 = vmatpush2.msra.mxu0 0.0
    %247 = vmatprep.subr.mxu0 0.0
    %248 = vmatpush2.msra.mxu0 0.0
    %249 = vmatprep.mubr.f32.mxu0 0.0
    %250 = vmatmul.mubr.f32.gmra.mxu0 %v183
    %v251 = vpop.f32.mrf.mxu0
    %v252 = vadd.f32 0.0, %v251
    %v253 = vpop.f32.mrf.mxu0
    %254 = vdwg.mxu0
    %v255 = vadd.f32 %v181, %v252
    %v256 = vtanh.pop %v255
    %s257 = scalar_lea.vmem %s3, 4
    %258 = vst.msk [vmem:[%s257] sm:$0x3] %vm99, %v256
    %s259 = scalar_lea.vmem %s0, 6
    %v260 = vld [vmem:[%s259] sm:$0x3]
    %v262 = vsel %vm23, %v256, 0
    %264 = vmatprep.subr.mxu0 0.0
    %265 = vmatpush1.msra.mxu0 0.0
    %266 = vmatprep.subr.mxu0 0.0
    %267 = vmatpush1.msra.mxu0 0.0
    %268 = vmatprep.subr.mxu0 0.0
    %269 = vmatpush1.msra.mxu0 0.0
    %270 = vmatprep.subr.mxu0 0.0
    %271 = vmatpush1.msra.mxu0 0.0
    %272 = vmatprep.subr.mxu0 0.0
    %273 = vmatpush1.msra.mxu0 0.0
    %274 = vmatprep.subr.mxu0 0.0
    %275 = vmatpush1.msra.mxu0 0.0
    %276 = vmatprep.subr.mxu0 0.0
    %277 = vmatpush1.msra.mxu0 0.0
    %278 = vmatprep.subr.mxu0 0.0
    %279 = vmatpush1.msra.mxu0 0.0
    %280 = vmatprep.subr.mxu0 0.0
    %281 = vmatpush1.msra.mxu0 0.0
    %282 = vmatprep.subr.mxu0 0.0
    %283 = vmatpush1.msra.mxu0 0.0
    %284 = vmatprep.subr.mxu0 0.0
    %285 = vmatpush1.msra.mxu0 0.0
    %286 = vmatprep.subr.mxu0 0.0
    %287 = vmatpush1.msra.mxu0 0.0
    %288 = vmatprep.subr.mxu0 0.0
    %289 = vmatpush1.msra.mxu0 %v20
    %290 = vmatprep.subr.mxu0 0.0
    %291 = vmatpush1.msra.mxu0 %v19
    %292 = vmatprep.subr.mxu0 0.0
    %293 = vmatpush1.msra.mxu0 %v18
    %294 = vmatprep.subr.mxu0 0.0
    %295 = vmatpush1.msra.mxu0 %v17
    %296 = vmatprep.subr.mxu0 0.0
    %297 = vmatpush2.msra.mxu0 0.0
    %298 = vmatprep.subr.mxu0 0.0
    %299 = vmatpush2.msra.mxu0 0.0
    %300 = vmatprep.subr.mxu0 0.0
    %301 = vmatpush2.msra.mxu0 0.0
    %302 = vmatprep.subr.mxu0 0.0
    %303 = vmatpush2.msra.mxu0 0.0
    %304 = vmatprep.subr.mxu0 0.0
    %305 = vmatpush2.msra.mxu0 0.0
    %306 = vmatprep.subr.mxu0 0.0
    %307 = vmatpush2.msra.mxu0 0.0
    %308 = vmatprep.subr.mxu0 0.0
    %309 = vmatpush2.msra.mxu0 0.0
    %310 = vmatprep.subr.mxu0 0.0
    %311 = vmatpush2.msra.mxu0 0.0
    %312 = vmatprep.subr.mxu0 0.0
    %313 = vmatpush2.msra.mxu0 0.0
    %314 = vmatprep.subr.mxu0 0.0
    %315 = vmatpush2.msra.mxu0 0.0
    %316 = vmatprep.subr.mxu0 0.0
    %317 = vmatpush2.msra.mxu0 0.0
    %318 = vmatprep.subr.mxu0 0.0
    %319 = vmatpush2.msra.mxu0 0.0
    %320 = vmatprep.subr.mxu0 0.0
    %321 = vmatpush2.msra.mxu0 0.0
    %322 = vmatprep.subr.mxu0 0.0
    %323 = vmatpush2.msra.mxu0 0.0
    %324 = vmatprep.subr.mxu0 0.0
    %325 = vmatpush2.msra.mxu0 0.0
    %326 = vmatprep.subr.mxu0 0.0
    %327 = vmatpush2.msra.mxu0 0.0
    %328 = vmatprep.mubr.f32.mxu0 0.0
    %329 = vmatmul.mubr.f32.gmra.mxu0 %v262
    %v330 = vpop.f32.mrf.mxu0
    %v331 = vadd.f32 0.0, %v330
    %v332 = vpop.f32.mrf.mxu0
    %333 = vdwg.mxu0
    %v334 = vadd.f32 %v260, %v331
    %v335 = vtanh.pop %v334
    %s336 = scalar_lea.vmem %s3, 6
    %337 = vst.msk [vmem:[%s336] sm:$0x3] %vm99, %v335
    %s338 = scalar_lea.vmem %s0, 8
    %v339 = vld [vmem:[%s338] sm:$0x3]
    %v341 = vsel %vm23, %v335, 0
    %343 = vmatprep.subr.mxu0 0.0
    %344 = vmatpush1.msra.mxu0 0.0
    %345 = vmatprep.subr.mxu0 0.0
    %346 = vmatpush1.msra.mxu0 0.0
    %347 = vmatprep.subr.mxu0 0.0
    %348 = vmatpush1.msra.mxu0 0.0
    %349 = vmatprep.subr.mxu0 0.0
    %350 = vmatpush1.msra.mxu0 0.0
    %351 = vmatprep.subr.mxu0 0.0
    %352 = vmatpush1.msra.mxu0 0.0
    %353 = vmatprep.subr.mxu0 0.0
    %354 = vmatpush1.msra.mxu0 0.0
    %355 = vmatprep.subr.mxu0 0.0
    %356 = vmatpush1.msra.mxu0 0.0
    %357 = vmatprep.subr.mxu0 0.0
    %358 = vmatpush1.msra.mxu0 0.0
    %359 = vmatprep.subr.mxu0 0.0
    %360 = vmatpush1.msra.mxu0 0.0
    %361 = vmatprep.subr.mxu0 0.0
    %362 = vmatpush1.msra.mxu0 0.0
    %363 = vmatprep.subr.mxu0 0.0
    %364 = vmatpush1.msra.mxu0 0.0
    %365 = vmatprep.subr.mxu0 0.0
    %366 = vmatpush1.msra.mxu0 0.0
    %367 = vmatprep.subr.mxu0 0.0
    %368 = vmatpush1.msra.mxu0 %v20
    %369 = vmatprep.subr.mxu0 0.0
    %370 = vmatpush1.msra.mxu0 %v19
    %371 = vmatprep.subr.mxu0 0.0
    %372 = vmatpush1.msra.mxu0 %v18
    %373 = vmatprep.subr.mxu0 0.0
    %374 = vmatpush1.msra.mxu0 %v17
    %375 = vmatprep.subr.mxu0 0.0
    %376 = vmatpush2.msra.mxu0 0.0
    %377 = vmatprep.subr.mxu0 0.0
    %378 = vmatpush2.msra.mxu0 0.0
    %379 = vmatprep.subr.mxu0 0.0
    %380 = vmatpush2.msra.mxu0 0.0
    %381 = vmatprep.subr.mxu0 0.0
    %382 = vmatpush2.msra.mxu0 0.0
    %383 = vmatprep.subr.mxu0 0.0
    %384 = vmatpush2.msra.mxu0 0.0
    %385 = vmatprep.subr.mxu0 0.0
    %386 = vmatpush2.msra.mxu0 0.0
    %387 = vmatprep.subr.mxu0 0.0
    %388 = vmatpush2.msra.mxu0 0.0
    %389 = vmatprep.subr.mxu0 0.0
    %390 = vmatpush2.msra.mxu0 0.0
    %391 = vmatprep.subr.mxu0 0.0
    %392 = vmatpush2.msra.mxu0 0.0
    %393 = vmatprep.subr.mxu0 0.0
    %394 = vmatpush2.msra.mxu0 0.0
    %395 = vmatprep.subr.mxu0 0.0
    %396 = vmatpush2.msra.mxu0 0.0
    %397 = vmatprep.subr.mxu0 0.0
    %398 = vmatpush2.msra.mxu0 0.0
    %399 = vmatprep.subr.mxu0 0.0
    %400 = vmatpush2.msra.mxu0 0.0
    %401 = vmatprep.subr.mxu0 0.0
    %402 = vmatpush2.msra.mxu0 0.0
    %403 = vmatprep.subr.mxu0 0.0
    %404 = vmatpush2.msra.mxu0 0.0
    %405 = vmatprep.subr.mxu0 0.0
    %406 = vmatpush2.msra.mxu0 0.0
    %407 = vmatprep.mubr.f32.mxu0 0.0
    %408 = vmatmul.mubr.f32.gmra.mxu0 %v341
    %v409 = vpop.f32.mrf.mxu0
    %v410 = vadd.f32 0.0, %v409
    %v411 = vpop.f32.mrf.mxu0
    %412 = vdwg.mxu0
    %v413 = vadd.f32 %v339, %v410
    %v414 = vtanh.pop %v413
    %s415 = scalar_lea.vmem %s3, 8
    %416 = vst.msk [vmem:[%s415] sm:$0x3] %vm99, %v414
    %s417 = scalar_lea.vmem %s0, 10
    %v418 = vld [vmem:[%s417] sm:$0x3]
    %v420 = vsel %vm23, %v414, 0
    %422 = vmatprep.subr.mxu0 0.0
    %423 = vmatpush1.msra.mxu0 0.0
    %424 = vmatprep.subr.mxu0 0.0
    %425 = vmatpush1.msra.mxu0 0.0
    %426 = vmatprep.subr.mxu0 0.0
    %427 = vmatpush1.msra.mxu0 0.0
    %428 = vmatprep.subr.mxu0 0.0
    %429 = vmatpush1.msra.mxu0 0.0
    %430 = vmatprep.subr.mxu0 0.0
    %431 = vmatpush1.msra.mxu0 0.0
    %432 = vmatprep.subr.mxu0 0.0
    %433 = vmatpush1.msra.mxu0 0.0
    %434 = vmatprep.subr.mxu0 0.0
    %435 = vmatpush1.msra.mxu0 0.0
    %436 = vmatprep.subr.mxu0 0.0
    %437 = vmatpush1.msra.mxu0 0.0
    %438 = vmatprep.subr.mxu0 0.0
    %439 = vmatpush1.msra.mxu0 0.0
    %440 = vmatprep.subr.mxu0 0.0
    %441 = vmatpush1.msra.mxu0 0.0
    %442 = vmatprep.subr.mxu0 0.0
    %443 = vmatpush1.msra.mxu0 0.0
    %444 = vmatprep.subr.mxu0 0.0
    %445 = vmatpush1.msra.mxu0 0.0
    %446 = vmatprep.subr.mxu0 0.0
    %447 = vmatpush1.msra.mxu0 %v20
    %448 = vmatprep.subr.mxu0 0.0
    %449 = vmatpush1.msra.mxu0 %v19
    %450 = vmatprep.subr.mxu0 0.0
    %451 = vmatpush1.msra.mxu0 %v18
    %452 = vmatprep.subr.mxu0 0.0
    %453 = vmatpush1.msra.mxu0 %v17
    %454 = vmatprep.subr.mxu0 0.0
    %455 = vmatpush2.msra.mxu0 0.0
    %456 = vmatprep.subr.mxu0 0.0
    %457 = vmatpush2.msra.mxu0 0.0
    %458 = vmatprep.subr.mxu0 0.0
    %459 = vmatpush2.msra.mxu0 0.0
    %460 = vmatprep.subr.mxu0 0.0
    %461 = vmatpush2.msra.mxu0 0.0
    %462 = vmatprep.subr.mxu0 0.0
    %463 = vmatpush2.msra.mxu0 0.0
    %464 = vmatprep.subr.mxu0 0.0
    %465 = vmatpush2.msra.mxu0 0.0
    %466 = vmatprep.subr.mxu0 0.0
    %467 = vmatpush2.msra.mxu0 0.0
    %468 = vmatprep.subr.mxu0 0.0
    %469 = vmatpush2.msra.mxu0 0.0
    %470 = vmatprep.subr.mxu0 0.0
    %471 = vmatpush2.msra.mxu0 0.0
    %472 = vmatprep.subr.mxu0 0.0
    %473 = vmatpush2.msra.mxu0 0.0
    %474 = vmatprep.subr.mxu0 0.0
    %475 = vmatpush2.msra.mxu0 0.0
    %476 = vmatprep.subr.mxu0 0.0
    %477 = vmatpush2.msra.mxu0 0.0
    %478 = vmatprep.subr.mxu0 0.0
    %479 = vmatpush2.msra.mxu0 0.0
    %480 = vmatprep.subr.mxu0 0.0
    %481 = vmatpush2.msra.mxu0 0.0
    %482 = vmatprep.subr.mxu0 0.0
    %483 = vmatpush2.msra.mxu0 0.0
    %484 = vmatprep.subr.mxu0 0.0
    %485 = vmatpush2.msra.mxu0 0.0
    %486 = vmatprep.mubr.f32.mxu0 0.0
    %487 = vmatmul.mubr.f32.gmra.mxu0 %v420
    %v488 = vpop.f32.mrf.mxu0
    %v489 = vadd.f32 0.0, %v488
    %v490 = vpop.f32.mrf.mxu0
    %491 = vdwg.mxu0
    %v492 = vadd.f32 %v418, %v489
    %v493 = vtanh.pop %v492
    %s494 = scalar_lea.vmem %s3, 10
    %495 = vst.msk [vmem:[%s494] sm:$0x3] %vm99, %v493
    %s496 = scalar_lea.vmem %s0, 12
    %v497 = vld [vmem:[%s496] sm:$0x3]
    %v499 = vsel %vm23, %v493, 0
    %501 = vmatprep.subr.mxu0 0.0
    %502 = vmatpush1.msra.mxu0 0.0
    %503 = vmatprep.subr.mxu0 0.0
    %504 = vmatpush1.msra.mxu0 0.0
    %505 = vmatprep.subr.mxu0 0.0
    %506 = vmatpush1.msra.mxu0 0.0
    %507 = vmatprep.subr.mxu0 0.0
    %508 = vmatpush1.msra.mxu0 0.0
    %509 = vmatprep.subr.mxu0 0.0
    %510 = vmatpush1.msra.mxu0 0.0
    %511 = vmatprep.subr.mxu0 0.0
    %512 = vmatpush1.msra.mxu0 0.0
    %513 = vmatprep.subr.mxu0 0.0
    %514 = vmatpush1.msra.mxu0 0.0
    %515 = vmatprep.subr.mxu0 0.0
    %516 = vmatpush1.msra.mxu0 0.0
    %517 = vmatprep.subr.mxu0 0.0
    %518 = vmatpush1.msra.mxu0 0.0
    %519 = vmatprep.subr.mxu0 0.0
    %520 = vmatpush1.msra.mxu0 0.0
    %521 = vmatprep.subr.mxu0 0.0
    %522 = vmatpush1.msra.mxu0 0.0
    %523 = vmatprep.subr.mxu0 0.0
    %524 = vmatpush1.msra.mxu0 0.0
    %525 = vmatprep.subr.mxu0 0.0
    %526 = vmatpush1.msra.mxu0 %v20
    %527 = vmatprep.subr.mxu0 0.0
    %528 = vmatpush1.msra.mxu0 %v19
    %529 = vmatprep.subr.mxu0 0.0
    %530 = vmatpush1.msra.mxu0 %v18
    %531 = vmatprep.subr.mxu0 0.0
    %532 = vmatpush1.msra.mxu0 %v17
    %533 = vmatprep.subr.mxu0 0.0
    %534 = vmatpush2.msra.mxu0 0.0
    %535 = vmatprep.subr.mxu0 0.0
    %536 = vmatpush2.msra.mxu0 0.0
    %537 = vmatprep.subr.mxu0 0.0
    %538 = vmatpush2.msra.mxu0 0.0
    %539 = vmatprep.subr.mxu0 0.0
    %540 = vmatpush2.msra.mxu0 0.0
    %541 = vmatprep.subr.mxu0 0.0
    %542 = vmatpush2.msra.mxu0 0.0
    %543 = vmatprep.subr.mxu0 0.0
    %544 = vmatpush2.msra.mxu0 0.0
    %545 = vmatprep.subr.mxu0 0.0
    %546 = vmatpush2.msra.mxu0 0.0
    %547 = vmatprep.subr.mxu0 0.0
    %548 = vmatpush2.msra.mxu0 0.0
    %549 = vmatprep.subr.mxu0 0.0
    %550 = vmatpush2.msra.mxu0 0.0
    %551 = vmatprep.subr.mxu0 0.0
    %552 = vmatpush2.msra.mxu0 0.0
    %553 = vmatprep.subr.mxu0 0.0
    %554 = vmatpush2.msra.mxu0 0.0
    %555 = vmatprep.subr.mxu0 0.0
    %556 = vmatpush2.msra.mxu0 0.0
    %557 = vmatprep.subr.mxu0 0.0
    %558 = vmatpush2.msra.mxu0 0.0
    %559 = vmatprep.subr.mxu0 0.0
    %560 = vmatpush2.msra.mxu0 0.0
    %561 = vmatprep.subr.mxu0 0.0
    %562 = vmatpush2.msra.mxu0 0.0
    %563 = vmatprep.subr.mxu0 0.0
    %564 = vmatpush2.msra.mxu0 0.0
    %565 = vmatprep.mubr.f32.mxu0 0.0
    %566 = vmatmul.mubr.f32.gmra.mxu0 %v499
    %v567 = vpop.f32.mrf.mxu0
    %v568 = vadd.f32 0.0, %v567
    %v569 = vpop.f32.mrf.mxu0
    %570 = vdwg.mxu0
    %v571 = vadd.f32 %v497, %v568
    %v572 = vtanh.pop %v571
    %s573 = scalar_lea.vmem %s3, 12
    %574 = vst.msk [vmem:[%s573] sm:$0x3] %vm99, %v572
    %s575 = scalar_lea.vmem %s0, 14
    %v576 = vld [vmem:[%s575] sm:$0x3]
    %v578 = vsel %vm23, %v572, 0
    %580 = vmatprep.subr.mxu0 0.0
    %581 = vmatpush1.msra.mxu0 0.0
    %582 = vmatprep.subr.mxu0 0.0
    %583 = vmatpush1.msra.mxu0 0.0
    %584 = vmatprep.subr.mxu0 0.0
    %585 = vmatpush1.msra.mxu0 0.0
    %586 = vmatprep.subr.mxu0 0.0
    %587 = vmatpush1.msra.mxu0 0.0
    %588 = vmatprep.subr.mxu0 0.0
    %589 = vmatpush1.msra.mxu0 0.0
    %590 = vmatprep.subr.mxu0 0.0
    %591 = vmatpush1.msra.mxu0 0.0
    %592 = vmatprep.subr.mxu0 0.0
    %593 = vmatpush1.msra.mxu0 0.0
    %594 = vmatprep.subr.mxu0 0.0
    %595 = vmatpush1.msra.mxu0 0.0
    %596 = vmatprep.subr.mxu0 0.0
    %597 = vmatpush1.msra.mxu0 0.0
    %598 = vmatprep.subr.mxu0 0.0
    %599 = vmatpush1.msra.mxu0 0.0
    %600 = vmatprep.subr.mxu0 0.0
    %601 = vmatpush1.msra.mxu0 0.0
    %602 = vmatprep.subr.mxu0 0.0
    %603 = vmatpush1.msra.mxu0 0.0
    %604 = vmatprep.subr.mxu0 0.0
    %605 = vmatpush1.msra.mxu0 %v20
    %606 = vmatprep.subr.mxu0 0.0
    %607 = vmatpush1.msra.mxu0 %v19
    %608 = vmatprep.subr.mxu0 0.0
    %609 = vmatpush1.msra.mxu0 %v18
    %610 = vmatprep.subr.mxu0 0.0
    %611 = vmatpush1.msra.mxu0 %v17
    %612 = vmatprep.subr.mxu0 0.0
    %613 = vmatpush2.msra.mxu0 0.0
    %614 = vmatprep.subr.mxu0 0.0
    %615 = vmatpush2.msra.mxu0 0.0
    %616 = vmatprep.subr.mxu0 0.0
    %617 = vmatpush2.msra.mxu0 0.0
    %618 = vmatprep.subr.mxu0 0.0
    %619 = vmatpush2.msra.mxu0 0.0
    %620 = vmatprep.subr.mxu0 0.0
    %621 = vmatpush2.msra.mxu0 0.0
    %622 = vmatprep.subr.mxu0 0.0
    %623 = vmatpush2.msra.mxu0 0.0
    %624 = vmatprep.subr.mxu0 0.0
    %625 = vmatpush2.msra.mxu0 0.0
    %626 = vmatprep.subr.mxu0 0.0
    %627 = vmatpush2.msra.mxu0 0.0
    %628 = vmatprep.subr.mxu0 0.0
    %629 = vmatpush2.msra.mxu0 0.0
    %630 = vmatprep.subr.mxu0 0.0
    %631 = vmatpush2.msra.mxu0 0.0
    %632 = vmatprep.subr.mxu0 0.0
    %633 = vmatpush2.msra.mxu0 0.0
    %634 = vmatprep.subr.mxu0 0.0
    %635 = vmatpush2.msra.mxu0 0.0
    %636 = vmatprep.subr.mxu0 0.0
    %637 = vmatpush2.msra.mxu0 0.0
    %638 = vmatprep.subr.mxu0 0.0
    %639 = vmatpush2.msra.mxu0 0.0
    %640 = vmatprep.subr.mxu0 0.0
    %641 = vmatpush2.msra.mxu0 0.0
    %642 = vmatprep.subr.mxu0 0.0
    %643 = vmatpush2.msra.mxu0 0.0
    %644 = vmatprep.mubr.f32.mxu0 0.0
    %645 = vmatmul.mubr.f32.gmra.mxu0 %v578
    %v646 = vpop.f32.mrf.mxu0
    %v647 = vadd.f32 0.0, %v646
    %v648 = vpop.f32.mrf.mxu0
    %649 = vdwg.mxu0
    %v650 = vadd.f32 %v576, %v647
    %v651 = vtanh.pop %v650
    %s652 = scalar_lea.vmem %s3, 14
    %653 = vst.msk [vmem:[%s652] sm:$0x3] %vm99, %v651
    %654 = vst.msk [vmem:[#allocation2] sm:$0x3] %vm99, %v651
    // Predicated region
    $region14: #{macro_and_autoencoder_rollout.4} parent=1 // pred_check
      _
    $region15: #{macro_and_autoencoder_rollout.4} parent=1 // pred_check_branch
      %656 = sbr.rel (0) target = $region17
    $region16: #{macro_and_autoencoder_rollout.4} parent=1 // pred_region
      _
    $region17: #{macro_and_autoencoder_rollout.4} parent=1 // pred_fallthru
      _
    // Predicated region
    $region18: #{macro_and_autoencoder_rollout.4} parent=1 // pred_check
      _
    $region19: #{macro_and_autoencoder_rollout.4} parent=1 // pred_check_branch
      %658 = sbr.rel (0) target = $region21
    $region20: #{macro_and_autoencoder_rollout.4} parent=1 // pred_region
      %s660 = ssub.s32 32, 32
      %661 = vsyncadd [#allocation3], %s660
      %s663 = sshll.u32 [#allocation2], 4
      %s664 = int_to_ptr.vmem [resolvable:$true] %s663
      %666 = dma.vmem_to_hbm [thread:$0]  %s664, 32, %s4, [#allocation3]
    $region21: #{macro_and_autoencoder_rollout.4} parent=1 // pred_fallthru
      _
    // Predicated region
    $region22: #{macro_and_autoencoder_rollout.4} parent=1 // pred_check
      _
    $region23: #{macro_and_autoencoder_rollout.4} parent=1 // pred_check_branch
      %668 = sbr.rel (0) target = $region25
    $region24: #{macro_and_autoencoder_rollout.4} parent=1 // pred_region
      _
    $region25: #{macro_and_autoencoder_rollout.4} parent=1 // pred_fallthru
      _
    // Predicated region
    $region26: #{macro_and_autoencoder_rollout.4} parent=1 // pred_check
      _
    $region27: #{macro_and_autoencoder_rollout.4} parent=1 // pred_check_branch
      %670 = sbr.rel (0) target = $region29
    $region28: #{macro_and_autoencoder_rollout.4} parent=1 // pred_region
      %671 = dma.done [#allocation3], 32
    $region29: #{macro_and_autoencoder_rollout.4} parent=1 // pred_fallthru
      _
    %672 = vsyncpa [#allocation3], 1

</llo_original>
